<compile_context>
chip_gen: v6e
topology: v6e:2x2x1
jax: 0.10.0
libtpu: 0.0.40
codegen_flags: <defaults>
</compile_context>

<pallas_src>
import math
import functools

import jax
import jax.numpy as jnp
from jax import lax
from jax.experimental import pallas as pl
from jax.experimental.pallas import tpu as pltpu


def _round_up(x, m):
    return (x + m - 1) // m * m


def _vmem_limit_bytes():
    """VMEM budget from hardware info (≈112 MiB on v5e/v6e, ≈56 MiB on v7x)."""
    try:
        info = pltpu.get_tpu_info()
        cap = getattr(info, "vmem_capacity_bytes", None)
        if cap:
            return int(cap) * 7 // 8
    except Exception:
        pass
    return 64 * 1024 * 1024


def _mha_kernel(q_ref, k_ref, v_ref,
                wq_ref, bq_ref, wk_ref, bk_ref, wv_ref, bv_ref,
                wc_ref, bc_ref,
                out_ref, attnv_ref,
                qh_ref, kh_ref, vh_ref, av_ref,
                *, h, d_kp, d_vp):
    """Grid = (batch, q_tile, head).  One step = one head of one query tile."""
    qi = pl.program_id(1)
    hh = pl.program_id(2)

    # ---- K/V projections: once per batch element (wide bf16 MXU matmuls) ---
    @pl.when((qi == 0) & (hh == 0))
    def _():
        k = k_ref[0]                                               # (Sk, Dp) bf16
        v = v_ref[0]
        kh = (jnp.dot(k, wk_ref[...], preferred_element_type=jnp.float32)
              + bk_ref[...]).astype(jnp.bfloat16)                  # (Sk, h*d_kp)
        vh = (jnp.dot(v, wv_ref[...], preferred_element_type=jnp.float32)
              + bv_ref[...]).astype(jnp.bfloat16)                  # (Sk, h*d_vp)
        for i in range(h):                    # static, 128-aligned lane slices
            kh_ref[i] = kh[:, i * d_kp:(i + 1) * d_kp]
            vh_ref[i] = vh[:, i * d_vp:(i + 1) * d_vp]

    # ---- Q projection: once per query tile (1/sqrt(d_k) folded on host) ----
    @pl.when(hh == 0)
    def _():
        q = q_ref[0]                                               # (tq, Dp) bf16
        qh = (jnp.dot(q, wq_ref[...], preferred_element_type=jnp.float32)
              + bq_ref[...]).astype(jnp.bfloat16)                  # (tq, h*d_kp)
        for i in range(h):
            qh_ref[i] = qh[:, i * d_kp:(i + 1) * d_kp]

    # ---- Per-head attention (dynamic index only on the leading axis) -------
    qh = qh_ref[hh]                                                # (tq, d_kp)
    kh = kh_ref[hh]                                                # (Sk, d_kp)
    vh = vh_ref[hh]                                                # (Sk, d_vp)

    # scores = qh @ kh.T (padded d_k lanes are zero on both sides -> exact)
    s = lax.dot_general(qh, kh, (((1,), (1,)), ((), ())),
                        preferred_element_type=jnp.float32)        # (tq, Sk)
    s = s - jnp.max(s, axis=-1, keepdims=True)
    e = jnp.exp(s)
    attn = e * pl.reciprocal(jnp.sum(e, axis=-1, keepdims=True), approx=True)
    # dropout: identity (eval mode)
    av_ref[hh] = jnp.dot(attn.astype(jnp.bfloat16), vh,
                         preferred_element_type=jnp.float32)       # (tq, d_vp)

    # ---- Last head: lane-dense attn_v store + one dense output projection --
    @pl.when(hh == pl.num_programs(2) - 1)
    def _():
        av = jnp.concatenate([av_ref[i] for i in range(h)], axis=-1)  # (tq, h*d_vp)
        attnv_ref[0] = av.astype(attnv_ref.dtype)
        proj = jnp.dot(av.astype(jnp.bfloat16), wc_ref[...],
                       preferred_element_type=jnp.float32)         # (tq, Dp)
        out_ref[0] = (proj + bc_ref[...]).astype(out_ref.dtype)


def multihead_attention(query, key, value, params, *, h, d_k, d_v):
    """query: (B, Sq, D); key/value: (B, Sk, D). Returns (output, attn_v)."""
    B, Sq, D = query.shape
    Sk = key.shape[1]
    assert value.shape[1] == Sk, "key and value must have the same seq length"

    wq, bq, wk, bk, wv, bv, wc, bc = params
    out_dtype = query.dtype

    # Lane-dense model dim and per-head dims (padded to 128).
    Dp = _round_up(D, 128)
    d_kp = _round_up(d_k, 128)
    d_vp = _round_up(d_v, 128)
    HDk = h * d_kp
    HDv = h * d_vp

    # Query-tile size bounds the (tq, Sk) score block held in vregs/VMEM.
    tq = min(512, _round_up(Sq, 8))
    Sqp = _round_up(Sq, tq)
    nq = Sqp // tq

    def pad_seq_feat(x, s_to):
        s_pad = s_to - x.shape[1]
        f_pad = Dp - x.shape[2]
        if s_pad or f_pad:
            x = jnp.pad(x, ((0, 0), (0, s_pad), (0, f_pad)))
        return x.astype(jnp.bfloat16)           # bf16 MXU operands, half HBM

    q_p = pad_seq_feat(query, Sqp)
    k_p = pad_seq_feat(key, Sk)
    v_p = pad_seq_feat(value, Sk)

    # One-time host-side weight layout: transpose (nn.Linear: y = x @ W.T + b),
    # head-split, pad per-head dims to 128 lanes with zeros, cast to bf16.
    def in_proj(w, b, dh, dhp, scale=1.0):
        # w: (h*dh, D), b: (1, h*dh)
        w_t = (w * scale).T                                    # (D, h*dh)
        if Dp != D:
            w_t = jnp.pad(w_t, ((0, Dp - D), (0, 0)))
        w3 = w_t.reshape(Dp, h, dh)
        if dhp != dh:
            w3 = jnp.pad(w3, ((0, 0), (0, 0), (0, dhp - dh)))
        b3 = (b * scale).reshape(1, h, dh)
        if dhp != dh:
            b3 = jnp.pad(b3, ((0, 0), (0, 0), (0, dhp - dh)))
        return (w3.reshape(Dp, h * dhp).astype(jnp.bfloat16),
                b3.reshape(1, h * dhp).astype(jnp.float32))

    scale = 1.0 / math.sqrt(d_k)                 # folded into W_q / b_q
    wq_f, bq_f = in_proj(wq, bq, d_k, d_kp, scale)
    wk_f, bk_f = in_proj(wk, bk, d_k, d_kp)
    wv_f, bv_f = in_proj(wv, bv, d_v, d_vp)

    # Output projection wc: (D, h*d_v) -> pre-transposed, padded (h*d_vp, Dp).
    wc_t = wc.T                                                # (h*d_v, D)
    if Dp != D:
        wc_t = jnp.pad(wc_t, ((0, 0), (0, Dp - D)))
    wc3 = wc_t.reshape(h, d_v, Dp)
    if d_vp != d_v:
        wc3 = jnp.pad(wc3, ((0, 0), (0, d_vp - d_v), (0, 0)))
    wc_f = wc3.reshape(HDv, Dp).astype(jnp.bfloat16)
    bc_f = (jnp.pad(bc, ((0, 0), (0, Dp - D))) if Dp != D else bc).astype(jnp.float32)

    kernel = functools.partial(_mha_kernel, h=h, d_kp=d_kp, d_vp=d_vp)

    grid_spec = pltpu.PrefetchScalarGridSpec(
        num_scalar_prefetch=0,
        grid=(B, nq, h),                           # head (reduction) axis last
        in_specs=[
            pl.BlockSpec((1, tq, Dp), lambda b, qi, hh: (b, qi, 0)),   # query
            pl.BlockSpec((1, Sk, Dp), lambda b, qi, hh: (b, 0, 0)),    # key
            pl.BlockSpec((1, Sk, Dp), lambda b, qi, hh: (b, 0, 0)),    # value
            pl.BlockSpec((Dp, HDk),   lambda b, qi, hh: (0, 0)),       # W_q (full)
            pl.BlockSpec((1, HDk),    lambda b, qi, hh: (0, 0)),       # b_q
            pl.BlockSpec((Dp, HDk),   lambda b, qi, hh: (0, 0)),       # W_k (full)
            pl.BlockSpec((1, HDk),    lambda b, qi, hh: (0, 0)),       # b_k
            pl.BlockSpec((Dp, HDv),   lambda b, qi, hh: (0, 0)),       # W_v (full)
            pl.BlockSpec((1, HDv),    lambda b, qi, hh: (0, 0)),       # b_v
            pl.BlockSpec((HDv, Dp),   lambda b, qi, hh: (0, 0)),       # W_c (full)
            pl.BlockSpec((1, Dp),     lambda b, qi, hh: (0, 0)),       # b_c
        ],
        out_specs=[
            pl.BlockSpec((1, tq, Dp),  lambda b, qi, hh: (b, qi, 0)),  # output
            pl.BlockSpec((1, tq, HDv), lambda b, qi, hh: (b, qi, 0)),  # attn_v
        ],
        scratch_shapes=[
            pltpu.VMEM((h, tq, d_kp), jnp.bfloat16),   # per-head Q projection
            pltpu.VMEM((h, Sk, d_kp), jnp.bfloat16),   # per-head K projection
            pltpu.VMEM((h, Sk, d_vp), jnp.bfloat16),   # per-head V projection
            pltpu.VMEM((h, tq, d_vp), jnp.float32),    # per-head attn @ V
        ],
    )

    out_p, attnv_p = pl.pallas_call(
        kernel,
        out_shape=(
            jax.ShapeDtypeStruct((B, Sqp, Dp), out_dtype),
            jax.ShapeDtypeStruct((B, Sqp, HDv), out_dtype),
        ),
        grid_spec=grid_spec,
        compiler_params=pltpu.CompilerParams(
            dimension_semantics=("parallel", "arbitrary", "arbitrary"),
            vmem_limit_bytes=_vmem_limit_bytes()),
    )(q_p, k_p, v_p, wq_f, bq_f, wk_f, bk_f, wv_f, bv_f, wc_f, bc_f)

    out = out_p[:, :Sq, :D]
    attnv = attnv_p[:, :Sq, :]
    if d_vp != d_v:                      # strip per-head lane padding (test-size only)
        attnv = attnv.reshape(B, Sq, h, d_vp)[..., :d_v].reshape(B, Sq, h * d_v)
    return out, attnv


def _reference(query, key, value, params, *, h, d_k, d_v):
    """Pure-JAX f32 reference mirroring the PyTorch forward (eval mode)."""
    wq, bq, wk, bk, wv, bv, wc, bc = params
    B, Sq, D = query.shape
    Sk = key.shape[1]

    def proj(x, w, b):
        return x @ w.T + b[0]

    q = proj(query, wq, bq).reshape(B, Sq, h, d_k).transpose(0, 2, 1, 3)
    k = proj(key, wk, bk).reshape(B, Sk, h, d_k).transpose(0, 2, 1, 3)
    v = proj(value, wv, bv).reshape(B, Sk, h, d_v).transpose(0, 2, 1, 3)

    scores = jnp.einsum("bhqd,bhkd->bhqk", q, k) / math.sqrt(d_k)
    attn = jax.nn.softmax(scores, axis=-1)
    attn_v = jnp.einsum("bhqk,bhkd->bhqd", attn, v)
    attn_v = attn_v.transpose(0, 2, 1, 3).reshape(B, Sq, h * d_v)
    out = attn_v @ wc.T + bc[0]
    return out, attn_v


if __name__ == "__main__":
    # Small, deterministic problem: batch=2, seq=8, d_model=32, heads=4.
    B, Sq, Sk = 2, 8, 8
    d_model, h = 32, 4
    d_k = d_model // h
    d_v = d_model // h

    key0 = jax.random.PRNGKey(0)
    keys = jax.random.split(key0, 12)

    def linear_init(kw, kb, out_f, in_f):
        bound = 1.0 / math.sqrt(in_f)
        w = jax.random.uniform(kw, (out_f, in_f), jnp.float32, -bound, bound)
        b = jax.random.uniform(kb, (1, out_f), jnp.float32, -bound, bound)
        return w, b

    wq, bq = linear_init(keys[0], keys[1], h * d_k, d_model)
    wk, bk = linear_init(keys[2], keys[3], h * d_k, d_model)
    wv, bv = linear_init(keys[4], keys[5], h * d_v, d_model)
    wc, bc = linear_init(keys[6], keys[7], d_model, h * d_v)
    params = (wq, bq, wk, bk, wv, bv, wc, bc)

    query = jax.random.normal(keys[8], (B, Sq, d_model), jnp.float32)
    key_ = jax.random.normal(keys[9], (B, Sk, d_model), jnp.float32)
    value = jax.random.normal(keys[10], (B, Sk, d_model), jnp.float32)

    out, attn_v = multihead_attention(query, key_, value, params,
                                      h=h, d_k=d_k, d_v=d_v)
    jax.block_until_ready((out, attn_v))

    ref_out, ref_attn_v = _reference(query, key_, value, params,
                                     h=h, d_k=d_k, d_v=d_v)
    # Tolerance reflects bf16 MXU operands + approximate EUP reciprocal in the
    # softmax; well above observed error, well below any structural mistake.
    assert jnp.allclose(out, ref_out, atol=2e-2, rtol=2e-2)
    assert jnp.allclose(attn_v, ref_attn_v, atol=2e-2, rtol=2e-2)

    print("KERNEL_OK")
</pallas_src>

<mosaic_0001>
module attributes {stable_mosaic.version = 11 : i64} {
  func.func @_mha_kernel(%arg0: i32, %arg1: i32, %arg2: i32, %arg3: memref<1x8x128xbf16, #tpu.memory_space<vmem>>, %arg4: memref<1x8x128xbf16, #tpu.memory_space<vmem>>, %arg5: memref<1x8x128xbf16, #tpu.memory_space<vmem>>, %arg6: memref<128x512xbf16, #tpu.memory_space<vmem>>, %arg7: memref<1x512xf32, #tpu.memory_space<vmem>>, %arg8: memref<128x512xbf16, #tpu.memory_space<vmem>>, %arg9: memref<1x512xf32, #tpu.memory_space<vmem>>, %arg10: memref<128x512xbf16, #tpu.memory_space<vmem>>, %arg11: memref<1x512xf32, #tpu.memory_space<vmem>>, %arg12: memref<512x128xbf16, #tpu.memory_space<vmem>>, %arg13: memref<1x128xf32, #tpu.memory_space<vmem>>, %arg14: memref<1x8x128xf32, #tpu.memory_space<vmem>>, %arg15: memref<1x8x512xf32, #tpu.memory_space<vmem>>, %arg16: memref<4x8x128xbf16, #tpu.memory_space<vmem>>, %arg17: memref<4x8x128xbf16, #tpu.memory_space<vmem>>, %arg18: memref<4x8x128xbf16, #tpu.memory_space<vmem>>, %arg19: memref<4x8x128xf32, #tpu.memory_space<vmem>>) attributes {dimension_semantics = [#tpu.dimension_semantics<parallel>, #tpu.dimension_semantics<arbitrary>, #tpu.dimension_semantics<arbitrary>], iteration_bounds = array<i64: 2, 1, 4>, scalar_prefetch = 0 : i64, scratch_operands = 4 : i64, tpu.core_type = #tpu.core_type<tc>, window_params = [{transform_indices = @transform_0, window_bounds = array<i64: 1, 8, 128>}, {transform_indices = @transform_1, window_bounds = array<i64: 1, 8, 128>}, {transform_indices = @transform_2, window_bounds = array<i64: 1, 8, 128>}, {pipeline_mode = #tpu.pipeline_mode<synchronous>, transform_indices = @transform_3, window_bounds = array<i64: 128, 512>}, {pipeline_mode = #tpu.pipeline_mode<synchronous>, transform_indices = @transform_4, window_bounds = array<i64: 1, 512>}, {pipeline_mode = #tpu.pipeline_mode<synchronous>, transform_indices = @transform_5, window_bounds = array<i64: 128, 512>}, {pipeline_mode = #tpu.pipeline_mode<synchronous>, transform_indices = @transform_6, window_bounds = array<i64: 1, 512>}, {pipeline_mode = #tpu.pipeline_mode<synchronous>, transform_indices = @transform_7, window_bounds = array<i64: 128, 512>}, {pipeline_mode = #tpu.pipeline_mode<synchronous>, transform_indices = @transform_8, window_bounds = array<i64: 1, 512>}, {pipeline_mode = #tpu.pipeline_mode<synchronous>, transform_indices = @transform_9, window_bounds = array<i64: 512, 128>}, {pipeline_mode = #tpu.pipeline_mode<synchronous>, transform_indices = @transform_10, window_bounds = array<i64: 1, 128>}, {transform_indices = @transform_11, window_bounds = array<i64: 1, 8, 128>}, {transform_indices = @transform_12, window_bounds = array<i64: 1, 8, 512>}]} {
    %c0_i32 = arith.constant 0 : i32
    %0 = arith.cmpi eq, %arg1, %c0_i32 : i32
    %c0_i32_0 = arith.constant 0 : i32
    %1 = arith.cmpi eq, %arg2, %c0_i32_0 : i32
    %2 = arith.andi %0, %1 : i1
    %3 = arith.extui %2 : i1 to i32
    %c0_i32_1 = arith.constant 0 : i32
    %4 = arith.cmpi ne, %3, %c0_i32_1 : i32
    scf.if %4 {
      %c0_15 = arith.constant 0 : index
      %c0_16 = arith.constant 0 : index
      %c0_17 = arith.constant 0 : index
      %37 = vector.load %arg4[%c0_15, %c0_16, %c0_17] : memref<1x8x128xbf16, #tpu.memory_space<vmem>>, vector<1x8x128xbf16>
      %38 = vector.shape_cast %37 : vector<1x8x128xbf16> to vector<8x128xbf16>
      %c0_18 = arith.constant 0 : index
      %c0_19 = arith.constant 0 : index
      %c0_20 = arith.constant 0 : index
      %39 = vector.load %arg5[%c0_18, %c0_19, %c0_20] : memref<1x8x128xbf16, #tpu.memory_space<vmem>>, vector<1x8x128xbf16>
      %40 = vector.shape_cast %39 : vector<1x8x128xbf16> to vector<8x128xbf16>
      %c0_21 = arith.constant 0 : index
      %c0_22 = arith.constant 0 : index
      %41 = vector.load %arg8[%c0_21, %c0_22] : memref<128x512xbf16, #tpu.memory_space<vmem>>, vector<128x512xbf16>
      %cst_23 = arith.constant dense<0.000000e+00> : vector<8x512xf32>
      %42 = tpu.matmul %38, %41, %cst_23 {dimension_numbers = #tpu.dot_dimension_numbers<[1], [0], [0], [1], [0, 0, 1, 1], [], []>} : vector<8x128xbf16>, vector<128x512xbf16>, vector<8x512xf32> -> vector<8x512xf32>
      %c0_24 = arith.constant 0 : index
      %c0_25 = arith.constant 0 : index
      %43 = vector.load %arg9[%c0_24, %c0_25] : memref<1x512xf32, #tpu.memory_space<vmem>>, vector<1x512xf32>
      %44 = vector.broadcast %43 : vector<1x512xf32> to vector<8x512xf32>
      %45 = arith.addf %42, %44 : vector<8x512xf32>
      %46 = arith.truncf %45 : vector<8x512xf32> to vector<8x512xbf16>
      %c0_26 = arith.constant 0 : index
      %c0_27 = arith.constant 0 : index
      %47 = vector.load %arg10[%c0_26, %c0_27] : memref<128x512xbf16, #tpu.memory_space<vmem>>, vector<128x512xbf16>
      %cst_28 = arith.constant dense<0.000000e+00> : vector<8x512xf32>
      %48 = tpu.matmul %40, %47, %cst_28 {dimension_numbers = #tpu.dot_dimension_numbers<[1], [0], [0], [1], [0, 0, 1, 1], [], []>} : vector<8x128xbf16>, vector<128x512xbf16>, vector<8x512xf32> -> vector<8x512xf32>
      %c0_29 = arith.constant 0 : index
      %c0_30 = arith.constant 0 : index
      %49 = vector.load %arg11[%c0_29, %c0_30] : memref<1x512xf32, #tpu.memory_space<vmem>>, vector<1x512xf32>
      %50 = vector.broadcast %49 : vector<1x512xf32> to vector<8x512xf32>
      %51 = arith.addf %48, %50 : vector<8x512xf32>
      %52 = arith.truncf %51 : vector<8x512xf32> to vector<8x512xbf16>
      %53 = vector.extract_strided_slice %46 {offsets = [0, 0], sizes = [8, 128], strides = [1, 1]} : vector<8x512xbf16> to vector<8x128xbf16>
      %c0_31 = arith.constant 0 : index
      %c0_32 = arith.constant 0 : index
      %c0_33 = arith.constant 0 : index
      %54 = vector.load %arg17[%c0_31, %c0_32, %c0_33] : memref<4x8x128xbf16, #tpu.memory_space<vmem>>, vector<1x8x128xbf16>
      %55 = vector.shape_cast %54 : vector<1x8x128xbf16> to vector<8x128xbf16>
      %56 = vector.shape_cast %53 : vector<8x128xbf16> to vector<1x8x128xbf16>
      tpu.vector_store %arg17[%c0_31, %c0_32, %c0_33], %56 {strides = array<i32>} : memref<4x8x128xbf16, #tpu.memory_space<vmem>>, vector<1x8x128xbf16>,
      %57 = vector.extract_strided_slice %52 {offsets = [0, 0], sizes = [8, 128], strides = [1, 1]} : vector<8x512xbf16> to vector<8x128xbf16>
      %c0_34 = arith.constant 0 : index
      %c0_35 = arith.constant 0 : index
      %c0_36 = arith.constant 0 : index
      %58 = vector.load %arg18[%c0_34, %c0_35, %c0_36] : memref<4x8x128xbf16, #tpu.memory_space<vmem>>, vector<1x8x128xbf16>
      %59 = vector.shape_cast %58 : vector<1x8x128xbf16> to vector<8x128xbf16>
      %60 = vector.shape_cast %57 : vector<8x128xbf16> to vector<1x8x128xbf16>
      tpu.vector_store %arg18[%c0_34, %c0_35, %c0_36], %60 {strides = array<i32>} : memref<4x8x128xbf16, #tpu.memory_space<vmem>>, vector<1x8x128xbf16>,
      %61 = vector.extract_strided_slice %46 {offsets = [0, 128], sizes = [8, 128], strides = [1, 1]} : vector<8x512xbf16> to vector<8x128xbf16>
      %c1 = arith.constant 1 : index
      %c0_37 = arith.constant 0 : index
      %c0_38 = arith.constant 0 : index
      %62 = vector.load %arg17[%c1, %c0_37, %c0_38] : memref<4x8x128xbf16, #tpu.memory_space<vmem>>, vector<1x8x128xbf16>
      %63 = vector.shape_cast %62 : vector<1x8x128xbf16> to vector<8x128xbf16>
      %64 = vector.shape_cast %61 : vector<8x128xbf16> to vector<1x8x128xbf16>
      tpu.vector_store %arg17[%c1, %c0_37, %c0_38], %64 {strides = array<i32>} : memref<4x8x128xbf16, #tpu.memory_space<vmem>>, vector<1x8x128xbf16>,
      %65 = vector.extract_strided_slice %52 {offsets = [0, 128], sizes = [8, 128], strides = [1, 1]} : vector<8x512xbf16> to vector<8x128xbf16>
      %c1_39 = arith.constant 1 : index
      %c0_40 = arith.constant 0 : index
      %c0_41 = arith.constant 0 : index
      %66 = vector.load %arg18[%c1_39, %c0_40, %c0_41] : memref<4x8x128xbf16, #tpu.memory_space<vmem>>, vector<1x8x128xbf16>
      %67 = vector.shape_cast %66 : vector<1x8x128xbf16> to vector<8x128xbf16>
      %68 = vector.shape_cast %65 : vector<8x128xbf16> to vector<1x8x128xbf16>
      tpu.vector_store %arg18[%c1_39, %c0_40, %c0_41], %68 {strides = array<i32>} : memref<4x8x128xbf16, #tpu.memory_space<vmem>>, vector<1x8x128xbf16>,
      %69 = vector.extract_strided_slice %46 {offsets = [0, 256], sizes = [8, 128], strides = [1, 1]} : vector<8x512xbf16> to vector<8x128xbf16>
      %c2 = arith.constant 2 : index
      %c0_42 = arith.constant 0 : index
      %c0_43 = arith.constant 0 : index
      %70 = vector.load %arg17[%c2, %c0_42, %c0_43] : memref<4x8x128xbf16, #tpu.memory_space<vmem>>, vector<1x8x128xbf16>
      %71 = vector.shape_cast %70 : vector<1x8x128xbf16> to vector<8x128xbf16>
      %72 = vector.shape_cast %69 : vector<8x128xbf16> to vector<1x8x128xbf16>
      tpu.vector_store %arg17[%c2, %c0_42, %c0_43], %72 {strides = array<i32>} : memref<4x8x128xbf16, #tpu.memory_space<vmem>>, vector<1x8x128xbf16>,
      %73 = vector.extract_strided_slice %52 {offsets = [0, 256], sizes = [8, 128], strides = [1, 1]} : vector<8x512xbf16> to vector<8x128xbf16>
      %c2_44 = arith.constant 2 : index
      %c0_45 = arith.constant 0 : index
      %c0_46 = arith.constant 0 : index
      %74 = vector.load %arg18[%c2_44, %c0_45, %c0_46] : memref<4x8x128xbf16, #tpu.memory_space<vmem>>, vector<1x8x128xbf16>
      %75 = vector.shape_cast %74 : vector<1x8x128xbf16> to vector<8x128xbf16>
      %76 = vector.shape_cast %73 : vector<8x128xbf16> to vector<1x8x128xbf16>
      tpu.vector_store %arg18[%c2_44, %c0_45, %c0_46], %76 {strides = array<i32>} : memref<4x8x128xbf16, #tpu.memory_space<vmem>>, vector<1x8x128xbf16>,
      %77 = vector.extract_strided_slice %46 {offsets = [0, 384], sizes = [8, 128], strides = [1, 1]} : vector<8x512xbf16> to vector<8x128xbf16>
      %c3 = arith.constant 3 : index
      %c0_47 = arith.constant 0 : index
      %c0_48 = arith.constant 0 : index
      %78 = vector.load %arg17[%c3, %c0_47, %c0_48] : memref<4x8x128xbf16, #tpu.memory_space<vmem>>, vector<1x8x128xbf16>
      %79 = vector.shape_cast %78 : vector<1x8x128xbf16> to vector<8x128xbf16>
      %80 = vector.shape_cast %77 : vector<8x128xbf16> to vector<1x8x128xbf16>
      tpu.vector_store %arg17[%c3, %c0_47, %c0_48], %80 {strides = array<i32>} : memref<4x8x128xbf16, #tpu.memory_space<vmem>>, vector<1x8x128xbf16>,
      %81 = vector.extract_strided_slice %52 {offsets = [0, 384], sizes = [8, 128], strides = [1, 1]} : vector<8x512xbf16> to vector<8x128xbf16>
      %c3_49 = arith.constant 3 : index
      %c0_50 = arith.constant 0 : index
      %c0_51 = arith.constant 0 : index
      %82 = vector.load %arg18[%c3_49, %c0_50, %c0_51] : memref<4x8x128xbf16, #tpu.memory_space<vmem>>, vector<1x8x128xbf16>
      %83 = vector.shape_cast %82 : vector<1x8x128xbf16> to vector<8x128xbf16>
      %84 = vector.shape_cast %81 : vector<8x128xbf16> to vector<1x8x128xbf16>
      tpu.vector_store %arg18[%c3_49, %c0_50, %c0_51], %84 {strides = array<i32>} : memref<4x8x128xbf16, #tpu.memory_space<vmem>>, vector<1x8x128xbf16>,
    } else {
    }
    %c0_i32_2 = arith.constant 0 : i32
    %5 = arith.cmpi eq, %arg2, %c0_i32_2 : i32
    %6 = arith.extui %5 : i1 to i32
    %c0_i32_3 = arith.constant 0 : i32
    %7 = arith.cmpi ne, %6, %c0_i32_3 : i32
    scf.if %7 {
      %c0_15 = arith.constant 0 : index
      %c0_16 = arith.constant 0 : index
      %c0_17 = arith.constant 0 : index
      %37 = vector.load %arg3[%c0_15, %c0_16, %c0_17] : memref<1x8x128xbf16, #tpu.memory_space<vmem>>, vector<1x8x128xbf16>
      %38 = vector.shape_cast %37 : vector<1x8x128xbf16> to vector<8x128xbf16>
      %c0_18 = arith.constant 0 : index
      %c0_19 = arith.constant 0 : index
      %39 = vector.load %arg6[%c0_18, %c0_19] : memref<128x512xbf16, #tpu.memory_space<vmem>>, vector<128x512xbf16>
      %cst_20 = arith.constant dense<0.000000e+00> : vector<8x512xf32>
      %40 = tpu.matmul %38, %39, %cst_20 {dimension_numbers = #tpu.dot_dimension_numbers<[1], [0], [0], [1], [0, 0, 1, 1], [], []>} : vector<8x128xbf16>, vector<128x512xbf16>, vector<8x512xf32> -> vector<8x512xf32>
      %c0_21 = arith.constant 0 : index
      %c0_22 = arith.constant 0 : index
      %41 = vector.load %arg7[%c0_21, %c0_22] : memref<1x512xf32, #tpu.memory_space<vmem>>, vector<1x512xf32>
      %42 = vector.broadcast %41 : vector<1x512xf32> to vector<8x512xf32>
      %43 = arith.addf %40, %42 : vector<8x512xf32>
      %44 = arith.truncf %43 : vector<8x512xf32> to vector<8x512xbf16>
      %45 = vector.extract_strided_slice %44 {offsets = [0, 0], sizes = [8, 128], strides = [1, 1]} : vector<8x512xbf16> to vector<8x128xbf16>
      %c0_23 = arith.constant 0 : index
      %c0_24 = arith.constant 0 : index
      %c0_25 = arith.constant 0 : index
      %46 = vector.load %arg16[%c0_23, %c0_24, %c0_25] : memref<4x8x128xbf16, #tpu.memory_space<vmem>>, vector<1x8x128xbf16>
      %47 = vector.shape_cast %46 : vector<1x8x128xbf16> to vector<8x128xbf16>
      %48 = vector.shape_cast %45 : vector<8x128xbf16> to vector<1x8x128xbf16>
      tpu.vector_store %arg16[%c0_23, %c0_24, %c0_25], %48 {strides = array<i32>} : memref<4x8x128xbf16, #tpu.memory_space<vmem>>, vector<1x8x128xbf16>,
      %49 = vector.extract_strided_slice %44 {offsets = [0, 128], sizes = [8, 128], strides = [1, 1]} : vector<8x512xbf16> to vector<8x128xbf16>
      %c1 = arith.constant 1 : index
      %c0_26 = arith.constant 0 : index
      %c0_27 = arith.constant 0 : index
      %50 = vector.load %arg16[%c1, %c0_26, %c0_27] : memref<4x8x128xbf16, #tpu.memory_space<vmem>>, vector<1x8x128xbf16>
      %51 = vector.shape_cast %50 : vector<1x8x128xbf16> to vector<8x128xbf16>
      %52 = vector.shape_cast %49 : vector<8x128xbf16> to vector<1x8x128xbf16>
      tpu.vector_store %arg16[%c1, %c0_26, %c0_27], %52 {strides = array<i32>} : memref<4x8x128xbf16, #tpu.memory_space<vmem>>, vector<1x8x128xbf16>,
      %53 = vector.extract_strided_slice %44 {offsets = [0, 256], sizes = [8, 128], strides = [1, 1]} : vector<8x512xbf16> to vector<8x128xbf16>
      %c2 = arith.constant 2 : index
      %c0_28 = arith.constant 0 : index
      %c0_29 = arith.constant 0 : index
      %54 = vector.load %arg16[%c2, %c0_28, %c0_29] : memref<4x8x128xbf16, #tpu.memory_space<vmem>>, vector<1x8x128xbf16>
      %55 = vector.shape_cast %54 : vector<1x8x128xbf16> to vector<8x128xbf16>
      %56 = vector.shape_cast %53 : vector<8x128xbf16> to vector<1x8x128xbf16>
      tpu.vector_store %arg16[%c2, %c0_28, %c0_29], %56 {strides = array<i32>} : memref<4x8x128xbf16, #tpu.memory_space<vmem>>, vector<1x8x128xbf16>,
      %57 = vector.extract_strided_slice %44 {offsets = [0, 384], sizes = [8, 128], strides = [1, 1]} : vector<8x512xbf16> to vector<8x128xbf16>
      %c3 = arith.constant 3 : index
      %c0_30 = arith.constant 0 : index
      %c0_31 = arith.constant 0 : index
      %58 = vector.load %arg16[%c3, %c0_30, %c0_31] : memref<4x8x128xbf16, #tpu.memory_space<vmem>>, vector<1x8x128xbf16>
      %59 = vector.shape_cast %58 : vector<1x8x128xbf16> to vector<8x128xbf16>
      %60 = vector.shape_cast %57 : vector<8x128xbf16> to vector<1x8x128xbf16>
      tpu.vector_store %arg16[%c3, %c0_30, %c0_31], %60 {strides = array<i32>} : memref<4x8x128xbf16, #tpu.memory_space<vmem>>, vector<1x8x128xbf16>,
    } else {
    }
    %8 = arith.index_cast %arg2 : i32 to index
    %c0 = arith.constant 0 : index
    %c0_4 = arith.constant 0 : index
    %9 = vector.load %arg16[%8, %c0, %c0_4] : memref<4x8x128xbf16, #tpu.memory_space<vmem>>, vector<1x8x128xbf16>
    %10 = vector.shape_cast %9 : vector<1x8x128xbf16> to vector<8x128xbf16>
    %11 = arith.index_cast %arg2 : i32 to index
    %c0_5 = arith.constant 0 : index
    %c0_6 = arith.constant 0 : index
    %12 = vector.load %arg17[%11, %c0_5, %c0_6] : memref<4x8x128xbf16, #tpu.memory_space<vmem>>, vector<1x8x128xbf16>
    %13 = vector.shape_cast %12 : vector<1x8x128xbf16> to vector<8x128xbf16>
    %14 = arith.index_cast %arg2 : i32 to index
    %c0_7 = arith.constant 0 : index
    %c0_8 = arith.constant 0 : index
    %15 = vector.load %arg18[%14, %c0_7, %c0_8] : memref<4x8x128xbf16, #tpu.memory_space<vmem>>, vector<1x8x128xbf16>
    %16 = vector.shape_cast %15 : vector<1x8x128xbf16> to vector<8x128xbf16>
    %cst = arith.constant dense<0.000000e+00> : vector<8x8xf32>
    %17 = tpu.matmul %10, %13, %cst {dimension_numbers = #tpu.dot_dimension_numbers<[1], [1], [0], [0], [0, 0, 1, 0], [], []>} : vector<8x128xbf16>, vector<8x128xbf16>, vector<8x8xf32> -> vector<8x8xf32>
    %cst_9 = arith.constant dense<0xFF800000> : vector<8xf32>
    %18 = vector.multi_reduction <maximumf>, %17, %cst_9 [1] : vector<8x8xf32> to vector<8xf32>
    %19 = vector.shape_cast %18 : vector<8xf32> to vector<8x1xf32>
    %20 = vector.broadcast %19 : vector<8x1xf32> to vector<8x8xf32>
    %21 = arith.subf %17, %20 : vector<8x8xf32>
    %22 = math.exp %21 : vector<8x8xf32>
    %cst_10 = arith.constant dense<0.000000e+00> : vector<8xf32>
    %23 = vector.multi_reduction <add>, %22, %cst_10 [1] : vector<8x8xf32> to vector<8xf32>
    %24 = vector.shape_cast %23 : vector<8xf32> to vector<8x1xf32>
    %25 = tpu.reciprocal %24 {approx = true} : vector<8x1xf32> -> vector<8x1xf32>
    %26 = vector.broadcast %25 : vector<8x1xf32> to vector<8x8xf32>
    %27 = arith.mulf %22, %26 : vector<8x8xf32>
    %28 = arith.truncf %27 : vector<8x8xf32> to vector<8x8xbf16>
    %cst_11 = arith.constant dense<0.000000e+00> : vector<8x128xf32>
    %29 = tpu.matmul %28, %16, %cst_11 {dimension_numbers = #tpu.dot_dimension_numbers<[1], [0], [0], [1], [0, 0, 1, 1], [], []>} : vector<8x8xbf16>, vector<8x128xbf16>, vector<8x128xf32> -> vector<8x128xf32>
    %30 = arith.index_cast %arg2 : i32 to index
    %c0_12 = arith.constant 0 : index
    %c0_13 = arith.constant 0 : index
    %31 = vector.load %arg19[%30, %c0_12, %c0_13] : memref<4x8x128xf32, #tpu.memory_space<vmem>>, vector<1x8x128xf32>
    %32 = vector.shape_cast %31 : vector<1x8x128xf32> to vector<8x128xf32>
    %33 = vector.shape_cast %29 : vector<8x128xf32> to vector<1x8x128xf32>
    tpu.vector_store %arg19[%30, %c0_12, %c0_13], %33 {strides = array<i32>} : memref<4x8x128xf32, #tpu.memory_space<vmem>>, vector<1x8x128xf32>,
    %c3_i32 = arith.constant 3 : i32
    %34 = arith.cmpi eq, %arg2, %c3_i32 : i32
    %35 = arith.extui %34 : i1 to i32
    %c0_i32_14 = arith.constant 0 : i32
    %36 = arith.cmpi ne, %35, %c0_i32_14 : i32
    scf.if %36 {
      %c0_15 = arith.constant 0 : index
      %c0_16 = arith.constant 0 : index
      %c0_17 = arith.constant 0 : index
      %37 = vector.load %arg19[%c0_15, %c0_16, %c0_17] : memref<4x8x128xf32, #tpu.memory_space<vmem>>, vector<1x8x128xf32>
      %38 = vector.shape_cast %37 : vector<1x8x128xf32> to vector<8x128xf32>
      %c1 = arith.constant 1 : index
      %c0_18 = arith.constant 0 : index
      %c0_19 = arith.constant 0 : index
      %39 = vector.load %arg19[%c1, %c0_18, %c0_19] : memref<4x8x128xf32, #tpu.memory_space<vmem>>, vector<1x8x128xf32>
      %40 = vector.shape_cast %39 : vector<1x8x128xf32> to vector<8x128xf32>
      %c2 = arith.constant 2 : index
      %c0_20 = arith.constant 0 : index
      %c0_21 = arith.constant 0 : index
      %41 = vector.load %arg19[%c2, %c0_20, %c0_21] : memref<4x8x128xf32, #tpu.memory_space<vmem>>, vector<1x8x128xf32>
      %42 = vector.shape_cast %41 : vector<1x8x128xf32> to vector<8x128xf32>
      %c3 = arith.constant 3 : index
      %c0_22 = arith.constant 0 : index
      %c0_23 = arith.constant 0 : index
      %43 = vector.load %arg19[%c3, %c0_22, %c0_23] : memref<4x8x128xf32, #tpu.memory_space<vmem>>, vector<1x8x128xf32>
      %44 = vector.shape_cast %43 : vector<1x8x128xf32> to vector<8x128xf32>
      %45 = tpu.concatenate %38, %40, %42, %44 in 1 : vector<8x128xf32>, vector<8x128xf32>, vector<8x128xf32>, vector<8x128xf32> -> vector<8x512xf32>
      %c0_24 = arith.constant 0 : index
      %c0_25 = arith.constant 0 : index
      %c0_26 = arith.constant 0 : index
      %46 = vector.load %arg15[%c0_24, %c0_25, %c0_26] : memref<1x8x512xf32, #tpu.memory_space<vmem>>, vector<1x8x512xf32>
      %47 = vector.shape_cast %46 : vector<1x8x512xf32> to vector<8x512xf32>
      %48 = vector.shape_cast %45 : vector<8x512xf32> to vector<1x8x512xf32>
      tpu.vector_store %arg15[%c0_24, %c0_25, %c0_26], %48 {strides = array<i32>} : memref<1x8x512xf32, #tpu.memory_space<vmem>>, vector<1x8x512xf32>,
      %49 = arith.truncf %45 : vector<8x512xf32> to vector<8x512xbf16>
      %c0_27 = arith.constant 0 : index
      %c0_28 = arith.constant 0 : index
      %50 = vector.load %arg12[%c0_27, %c0_28] : memref<512x128xbf16, #tpu.memory_space<vmem>>, vector<512x128xbf16>
      %cst_29 = arith.constant dense<0.000000e+00> : vector<8x128xf32>
      %51 = tpu.matmul %49, %50, %cst_29 {dimension_numbers = #tpu.dot_dimension_numbers<[1], [0], [0], [1], [0, 0, 1, 1], [], []>} : vector<8x512xbf16>, vector<512x128xbf16>, vector<8x128xf32> -> vector<8x128xf32>
      %c0_30 = arith.constant 0 : index
      %c0_31 = arith.constant 0 : index
      %52 = vector.load %arg13[%c0_30, %c0_31] : memref<1x128xf32, #tpu.memory_space<vmem>>, vector<1x128xf32>
      %53 = vector.broadcast %52 : vector<1x128xf32> to vector<8x128xf32>
      %54 = arith.addf %51, %53 : vector<8x128xf32>
      %c0_32 = arith.constant 0 : index
      %c0_33 = arith.constant 0 : index
      %c0_34 = arith.constant 0 : index
      %55 = vector.load %arg14[%c0_32, %c0_33, %c0_34] : memref<1x8x128xf32, #tpu.memory_space<vmem>>, vector<1x8x128xf32>
      %56 = vector.shape_cast %55 : vector<1x8x128xf32> to vector<8x128xf32>
      %57 = vector.shape_cast %54 : vector<8x128xf32> to vector<1x8x128xf32>
      tpu.vector_store %arg14[%c0_32, %c0_33, %c0_34], %57 {strides = array<i32>} : memref<1x8x128xf32, #tpu.memory_space<vmem>>, vector<1x8x128xf32>,
    } else {
    }
    return
  }
  func.func @transform_0(%arg0: i32, %arg1: i32, %arg2: i32) -> (i32, i32, i32) {
    %c0_i32 = arith.constant 0 : i32
    %c0_i32_0 = arith.constant 0 : i32
    return %arg0, %arg1, %c0_i32 : i32, i32, i32
  }
  func.func @transform_1(%arg0: i32, %arg1: i32, %arg2: i32) -> (i32, i32, i32) {
    %c0_i32 = arith.constant 0 : i32
    %c0_i32_0 = arith.constant 0 : i32
    %c0_i32_1 = arith.constant 0 : i32
    return %arg0, %c0_i32, %c0_i32_0 : i32, i32, i32
  }
  func.func @transform_2(%arg0: i32, %arg1: i32, %arg2: i32) -> (i32, i32, i32) {
    %c0_i32 = arith.constant 0 : i32
    %c0_i32_0 = arith.constant 0 : i32
    %c0_i32_1 = arith.constant 0 : i32
    return %arg0, %c0_i32, %c0_i32_0 : i32, i32, i32
  }
  func.func @transform_3(%arg0: i32, %arg1: i32, %arg2: i32) -> (i32, i32) {
    %c0_i32 = arith.constant 0 : i32
    %c0_i32_0 = arith.constant 0 : i32
    %c0_i32_1 = arith.constant 0 : i32
    return %c0_i32, %c0_i32_0 : i32, i32
  }
  func.func @transform_4(%arg0: i32, %arg1: i32, %arg2: i32) -> (i32, i32) {
    %c0_i32 = arith.constant 0 : i32
    %c0_i32_0 = arith.constant 0 : i32
    %c0_i32_1 = arith.constant 0 : i32
    return %c0_i32, %c0_i32_0 : i32, i32
  }
  func.func @transform_5(%arg0: i32, %arg1: i32, %arg2: i32) -> (i32, i32) {
    %c0_i32 = arith.constant 0 : i32
    %c0_i32_0 = arith.constant 0 : i32
    %c0_i32_1 = arith.constant 0 : i32
    return %c0_i32, %c0_i32_0 : i32, i32
  }
  func.func @transform_6(%arg0: i32, %arg1: i32, %arg2: i32) -> (i32, i32) {
    %c0_i32 = arith.constant 0 : i32
    %c0_i32_0 = arith.constant 0 : i32
    %c0_i32_1 = arith.constant 0 : i32
    return %c0_i32, %c0_i32_0 : i32, i32
  }
  func.func @transform_7(%arg0: i32, %arg1: i32, %arg2: i32) -> (i32, i32) {
    %c0_i32 = arith.constant 0 : i32
    %c0_i32_0 = arith.constant 0 : i32
    %c0_i32_1 = arith.constant 0 : i32
    return %c0_i32, %c0_i32_0 : i32, i32
  }
  func.func @transform_8(%arg0: i32, %arg1: i32, %arg2: i32) -> (i32, i32) {
    %c0_i32 = arith.constant 0 : i32
    %c0_i32_0 = arith.constant 0 : i32
    %c0_i32_1 = arith.constant 0 : i32
    return %c0_i32, %c0_i32_0 : i32, i32
  }
  func.func @transform_9(%arg0: i32, %arg1: i32, %arg2: i32) -> (i32, i32) {
    %c0_i32 = arith.constant 0 : i32
    %c0_i32_0 = arith.constant 0 : i32
    %c0_i32_1 = arith.constant 0 : i32
    return %c0_i32, %c0_i32_0 : i32, i32
  }
  func.func @transform_10(%arg0: i32, %arg1: i32, %arg2: i32) -> (i32, i32) {
    %c0_i32 = arith.constant 0 : i32
    %c0_i32_0 = arith.constant 0 : i32
    %c0_i32_1 = arith.constant 0 : i32
    return %c0_i32, %c0_i32_0 : i32, i32
  }
  func.func @transform_11(%arg0: i32, %arg1: i32, %arg2: i32) -> (i32, i32, i32) {
    %c0_i32 = arith.constant 0 : i32
    %c0_i32_0 = arith.constant 0 : i32
    return %arg0, %arg1, %c0_i32 : i32, i32, i32
  }
  func.func @transform_12(%arg0: i32, %arg1: i32, %arg2: i32) -> (i32, i32, i32) {
    %c0_i32 = arith.constant 0 : i32
    %c0_i32_0 = arith.constant 0 : i32
    return %arg0, %arg1, %c0_i32 : i32, i32, i32
  }
}

</mosaic_0001>

<llo_original>
// kernel: tpu_custom_call.1
$region0: #{tpu_custom_call.1}
  #allocation0 [shape = 'u32[]', space=smem, size = 0x4, offset = 0x4, fixed_abs, tag = 'smem constant byte address 0x4 - core index']
  #allocation1 [shape = 'u32[144,128]{1,0:T(1,128)}', space=vmem, size = 0x12000, scoped, tag = 'internal scratch']
  #allocation2 [shape = 'bf16[4,8,128]{2,1,0:T(8,128)(2,1)}', space=vmem, size = 0x2000, scoped, tag = 'scratch operand']
  #allocation3 [shape = 'bf16[4,8,128]{2,1,0:T(8,128)(2,1)}', space=vmem, size = 0x2000, scoped, tag = 'scratch operand']
  #allocation4 [shape = 'bf16[4,8,128]{2,1,0:T(8,128)(2,1)}', space=vmem, size = 0x2000, scoped, tag = 'scratch operand']
  #allocation5 [shape = 'f32[4,8,128]{2,1,0:T(8,128)}', space=vmem, size = 0x4000, scoped, tag = 'scratch operand']
  %s0 = inlined_call_operand.hbm [shape: bf16[2,8,128], index: 0, kind: input, shape index: {}]
  %s1 = inlined_call_operand.hbm [shape: bf16[2,8,128], index: 1, kind: input, shape index: {}]
  %s2 = inlined_call_operand.hbm [shape: bf16[2,8,128], index: 2, kind: input, shape index: {}]
  %s3 = inlined_call_operand.hbm [shape: bf16[128,512], index: 3, kind: input, shape index: {}]
  %s4 = inlined_call_operand.vmem [shape: f32[1,512], index: 4, kind: input, shape index: {}]
  %s5 = inlined_call_operand.hbm [shape: bf16[128,512], index: 5, kind: input, shape index: {}]
  %s6 = inlined_call_operand.vmem [shape: f32[1,512], index: 6, kind: input, shape index: {}]
  %s7 = inlined_call_operand.hbm [shape: bf16[128,512], index: 7, kind: input, shape index: {}]
  %s8 = inlined_call_operand.vmem [shape: f32[1,512], index: 8, kind: input, shape index: {}]
  %s9 = inlined_call_operand.hbm [shape: bf16[512,128], index: 9, kind: input, shape index: {}]
  %s10 = inlined_call_operand.vmem [shape: f32[1,128], index: 10, kind: input, shape index: {}]
  %s11 = inlined_call_operand.hbm [shape: f32[2,8,128], index: 11, kind: output, shape index: {0}]
  %s12 = inlined_call_operand.hbm [shape: f32[2,8,512], index: 12, kind: output, shape index: {1}]
  %13 = xla_tuple %s11, %s12
  %s14 = sld [smem:[#allocation0]]
  $region125: #{tpu_custom_call.1} parent=0
    _
  %s16 = ssub.s32 1, %s14
  %s17 = scalar_select 0, %s16, %s14
  $region1: #{tpu_custom_call.1} parent=0
    #allocation6 [shape = 'u8[4096]{0}', space=vmem, size = 0x1000, scoped, tag = 'input window, operand 0']
    #allocation7 [shape = 's32[2]{0}', space=sflag, size = 0x8, scoped, tag = 'scoped memory for tpu_custom_call.1']
    #allocation8 [shape = 's32[2]{0}', space=sflag, size = 0x8, scoped, tag = 'scoped memory for tpu_custom_call.1']
    #allocation9 [shape = 'u8[4096]{0}', space=vmem, size = 0x1000, scoped, tag = 'input window, operand 1']
    #allocation10 [shape = 's32[2]{0}', space=sflag, size = 0x8, scoped, tag = 'scoped memory for tpu_custom_call.1']
    #allocation11 [shape = 'u8[4096]{0}', space=vmem, size = 0x1000, scoped, tag = 'input window, operand 2']
    #allocation12 [shape = 'u8[131072]{0}', space=vmem, size = 0x20000, scoped, tag = 'input window, operand 3, single buffered']
    #allocation13 [shape = 's32[1]{0}', space=sflag, size = 0x4, scoped, tag = 'scoped memory for tpu_custom_call.1']
    #allocation14 [shape = 'u8[131072]{0}', space=vmem, size = 0x20000, scoped, tag = 'input window, operand 5, single buffered']
    #allocation15 [shape = 'u8[131072]{0}', space=vmem, size = 0x20000, scoped, tag = 'input window, operand 7, single buffered']
    #allocation16 [shape = 's32[1]{0}', space=sflag, size = 0x4, scoped, tag = 'scoped memory for tpu_custom_call.1']
    #allocation17 [shape = 'u8[131072]{0}', space=vmem, size = 0x20000, scoped, tag = 'input window, operand 9, single buffered']
    #allocation18 [shape = 'u8[8192]{0}', space=vmem, size = 0x2000, scoped, tag = 'output window, operand 0']
    #allocation19 [shape = 'u8[32768]{0}', space=vmem, size = 0x8000, scoped, tag = 'output window, operand 1']
    #allocation20 [shape = 's32[2]{0}', space=sflag, size = 0x8, scoped, tag = 'scoped memory for tpu_custom_call.1']
    %18 = vsyncpa [#allocation7], 0
    %s19 = scalar_lea.sflag [#allocation7], 1
    %20 = vsyncpa %s19, 0
    %21 = vsyncpa [#allocation10], 0
    %s22 = scalar_lea.sflag [#allocation10], 1
    %23 = vsyncpa %s22, 0
    %24 = vsyncpa [#allocation13], 0
    %25 = vsyncpa [#allocation16], 0
    %26 = vsyncpa [#allocation8], 0
    %s27 = scalar_lea.sflag [#allocation8], 1
    %28 = vsyncpa %s27, 0
    %29 = vsyncpa [#allocation20], 0
    %s30 = scalar_lea.sflag [#allocation20], 1
    %31 = vsyncpa %s30, 0
    loop: start=0, step=1, limit=10
    $region2: #{tpu_custom_call.1} parent=1 // loop_pre_header
      _
    $region3: #{tpu_custom_call.1} parent=1 // loop_header
      %s33 = sphi 0, %s37
      %p34 = scmp.ge.s32.totalorder %s33, 10
      %s40 = sphi 0, %s59
      %s41 = sphi 0, %s55
      %s42 = sphi 0, %s51
      %s43 = sphi 0, %s40
      %s44 = sphi 0, %s41
      %s45 = sphi 0, %s42
      %s46 = sphi 0, %s43
      %s47 = sphi 0, %s44
      %s48 = sphi 0, %s45
      %s64 = sphi 0, %s66
      %s67 = sphi 0, %s64
      %s68 = sphi 0, %s67
      %s84 = sphi 0, %s68
      %s90 = sphi 0, %s92
      %s93 = sphi 0, %s90
      %s94 = sphi 0, %s93
      %s110 = sphi 0, %s94
      %s116 = sphi 0, %s118
      %s119 = sphi 0, %s116
      %s120 = sphi 0, %s119
      %s136 = sphi 0, %s120
      %s140 = sphi 0, %s140
      %s142 = sphi 0, %s140
      %s143 = sphi 0, %s142
      %s157 = sphi 0, %s143
      %s161 = sphi 0, %s161
      %s163 = sphi 0, %s161
      %s164 = sphi 0, %s163
      %s178 = sphi 0, %s164
      %s182 = sphi 0, %s182
      %s184 = sphi 0, %s182
      %s185 = sphi 0, %s184
      %s199 = sphi 0, %s185
      %s203 = sphi 0, %s203
      %s205 = sphi 0, %s203
      %s206 = sphi 0, %s205
      %s220 = sphi 0, %s206
      %s224 = sphi 0, %s224
      %s226 = sphi 0, %s224
      %s227 = sphi 0, %s226
      %s241 = sphi 0, %s227
      %s245 = sphi 0, %s245
      %s247 = sphi 0, %s245
      %s248 = sphi 0, %s247
      %s262 = sphi 0, %s248
      %s266 = sphi 0, %s266
      %s268 = sphi 0, %s266
      %s269 = sphi 0, %s268
      %s283 = sphi 0, %s269
      %s287 = sphi 0, %s287
      %s289 = sphi 0, %s287
      %s290 = sphi 0, %s289
      %s304 = sphi 0, %s290
      %s312 = sphi 0, %s314
      %s315 = sphi 0, %s312
      %s316 = sphi 0, %s315
      %s332 = sphi 0, %s316
      %s340 = sphi 0, %s342
      %s343 = sphi 0, %s340
      %s344 = sphi 0, %s343
      %s360 = sphi 0, %s344
    $region4: #{tpu_custom_call.1} parent=1 // loop_header_branch
      %36 = sbr.rel (%p34) target = $region8
    $region5: #{tpu_custom_call.1} parent=1 // loop_body
      %s38 = ssub.s32 %s33, 1
      %s39 = ssub.s32 %s33, 2
      %s49 = sadd.s32 1, %s42
      %p50 = scmp.ge.s32.totalorder %s49, 4
      %s51 = scalar_select %p50, 0, %s49
      %s52 = sadd.s32 1, %s41
      %s53 = scalar_select %p50, %s52, %s41
      %p54 = scmp.ge.s32.totalorder %s53, 1
      %s55 = scalar_select %p54, 0, %s53
      %s56 = sadd.s32 1, %s40
      %s57 = scalar_select %p54, %s56, %s40
      %p58 = scmp.ge.s32.totalorder %s57, 2
      %s59 = scalar_select %p58, 0, %s57
      %s60 = ssub.s32 %s40, %s59
      %s61 = ssub.s32 %s41, %s55
      %s62 = sor.u32 %s60, %s61
      %p63 = scmp.eq.s32.totalorder %s62, 0
      %s65 = sadd.s32 %s64, 1
      %s66 = scalar_select %p63, %s64, %s65
      %p69 = pneg %p63
      %p70 = scmp.eq.s32.totalorder %s33, 7
      %p71 = por %p69, %p70
      %p72 = scmp.ne.s32.totalorder %s64, %s67
      %p73 = scmp.eq.s32.totalorder %s33, 0
      %p74 = por %p72, %p73
      %p75 = scmp.ne.s32.totalorder %s64, %s67
      %p76 = scmp.eq.s32.totalorder %s38, 7
      %p77 = por %p75, %p76
      %p78 = scmp.ne.s32.totalorder %s67, %s68
      %p79 = scmp.eq.s32.totalorder %s38, 0
      %p80 = por %p78, %p79
      %p81 = scmp.ne.s32.totalorder %s67, %s68
      %p82 = scmp.eq.s32.totalorder %s39, 7
      %p83 = por %p81, %p82
      %p85 = scmp.ne.s32.totalorder %s68, %s84
      %p86 = scmp.eq.s32.totalorder %s39, 0
      %p87 = por %p85, %p86
      %s88 = ssub.s32 %s40, %s59
      %p89 = scmp.eq.s32.totalorder %s88, 0
      %s91 = sadd.s32 %s90, 1
      %s92 = scalar_select %p89, %s90, %s91
      %p95 = pneg %p89
      %p96 = scmp.eq.s32.totalorder %s33, 7
      %p97 = por %p95, %p96
      %p98 = scmp.ne.s32.totalorder %s90, %s93
      %p99 = scmp.eq.s32.totalorder %s33, 0
      %p100 = por %p98, %p99
      %p101 = scmp.ne.s32.totalorder %s90, %s93
      %p102 = scmp.eq.s32.totalorder %s38, 7
      %p103 = por %p101, %p102
      %p104 = scmp.ne.s32.totalorder %s93, %s94
      %p105 = scmp.eq.s32.totalorder %s38, 0
      %p106 = por %p104, %p105
      %p107 = scmp.ne.s32.totalorder %s93, %s94
      %p108 = scmp.eq.s32.totalorder %s39, 7
      %p109 = por %p107, %p108
      %p111 = scmp.ne.s32.totalorder %s94, %s110
      %p112 = scmp.eq.s32.totalorder %s39, 0
      %p113 = por %p111, %p112
      %s114 = ssub.s32 %s40, %s59
      %p115 = scmp.eq.s32.totalorder %s114, 0
      %s117 = sadd.s32 %s116, 1
      %s118 = scalar_select %p115, %s116, %s117
      %p121 = pneg %p115
      %p122 = scmp.eq.s32.totalorder %s33, 7
      %p123 = por %p121, %p122
      %p124 = scmp.ne.s32.totalorder %s116, %s119
      %p125 = scmp.eq.s32.totalorder %s33, 0
      %p126 = por %p124, %p125
      %p127 = scmp.ne.s32.totalorder %s116, %s119
      %p128 = scmp.eq.s32.totalorder %s38, 7
      %p129 = por %p127, %p128
      %p130 = scmp.ne.s32.totalorder %s119, %s120
      %p131 = scmp.eq.s32.totalorder %s38, 0
      %p132 = por %p130, %p131
      %p133 = scmp.ne.s32.totalorder %s119, %s120
      %p134 = scmp.eq.s32.totalorder %s39, 7
      %p135 = por %p133, %p134
      %p137 = scmp.ne.s32.totalorder %s120, %s136
      %p138 = scmp.eq.s32.totalorder %s39, 0
      %p139 = por %p137, %p138
      %s141 = sadd.s32 %s140, 1
      %p144 = scmp.eq.s32.totalorder %s33, 7
      %p145 = scmp.ne.s32.totalorder %s140, %s142
      %p146 = scmp.eq.s32.totalorder %s33, 0
      %p147 = por %p145, %p146
      %p148 = scmp.ne.s32.totalorder %s140, %s142
      %p149 = scmp.eq.s32.totalorder %s38, 7
      %p150 = por %p148, %p149
      %p151 = scmp.ne.s32.totalorder %s142, %s143
      %p152 = scmp.eq.s32.totalorder %s38, 0
      %p153 = por %p151, %p152
      %p154 = scmp.ne.s32.totalorder %s142, %s143
      %p155 = scmp.eq.s32.totalorder %s39, 7
      %p156 = por %p154, %p155
      %p158 = scmp.ne.s32.totalorder %s143, %s157
      %p159 = scmp.eq.s32.totalorder %s39, 0
      %p160 = por %p158, %p159
      %s162 = sadd.s32 %s161, 1
      %p165 = scmp.eq.s32.totalorder %s33, 7
      %p166 = scmp.ne.s32.totalorder %s161, %s163
      %p167 = scmp.eq.s32.totalorder %s33, 0
      %p168 = por %p166, %p167
      %p169 = scmp.ne.s32.totalorder %s161, %s163
      %p170 = scmp.eq.s32.totalorder %s38, 7
      %p171 = por %p169, %p170
      %p172 = scmp.ne.s32.totalorder %s163, %s164
      %p173 = scmp.eq.s32.totalorder %s38, 0
      %p174 = por %p172, %p173
      %p175 = scmp.ne.s32.totalorder %s163, %s164
      %p176 = scmp.eq.s32.totalorder %s39, 7
      %p177 = por %p175, %p176
      %p179 = scmp.ne.s32.totalorder %s164, %s178
      %p180 = scmp.eq.s32.totalorder %s39, 0
      %p181 = por %p179, %p180
      %s183 = sadd.s32 %s182, 1
      %p186 = scmp.eq.s32.totalorder %s33, 7
      %p187 = scmp.ne.s32.totalorder %s182, %s184
      %p188 = scmp.eq.s32.totalorder %s33, 0
      %p189 = por %p187, %p188
      %p190 = scmp.ne.s32.totalorder %s182, %s184
      %p191 = scmp.eq.s32.totalorder %s38, 7
      %p192 = por %p190, %p191
      %p193 = scmp.ne.s32.totalorder %s184, %s185
      %p194 = scmp.eq.s32.totalorder %s38, 0
      %p195 = por %p193, %p194
      %p196 = scmp.ne.s32.totalorder %s184, %s185
      %p197 = scmp.eq.s32.totalorder %s39, 7
      %p198 = por %p196, %p197
      %p200 = scmp.ne.s32.totalorder %s185, %s199
      %p201 = scmp.eq.s32.totalorder %s39, 0
      %p202 = por %p200, %p201
      %s204 = sadd.s32 %s203, 1
      %p207 = scmp.eq.s32.totalorder %s33, 7
      %p208 = scmp.ne.s32.totalorder %s203, %s205
      %p209 = scmp.eq.s32.totalorder %s33, 0
      %p210 = por %p208, %p209
      %p211 = scmp.ne.s32.totalorder %s203, %s205
      %p212 = scmp.eq.s32.totalorder %s38, 7
      %p213 = por %p211, %p212
      %p214 = scmp.ne.s32.totalorder %s205, %s206
      %p215 = scmp.eq.s32.totalorder %s38, 0
      %p216 = por %p214, %p215
      %p217 = scmp.ne.s32.totalorder %s205, %s206
      %p218 = scmp.eq.s32.totalorder %s39, 7
      %p219 = por %p217, %p218
      %p221 = scmp.ne.s32.totalorder %s206, %s220
      %p222 = scmp.eq.s32.totalorder %s39, 0
      %p223 = por %p221, %p222
      %s225 = sadd.s32 %s224, 1
      %p228 = scmp.eq.s32.totalorder %s33, 7
      %p229 = scmp.ne.s32.totalorder %s224, %s226
      %p230 = scmp.eq.s32.totalorder %s33, 0
      %p231 = por %p229, %p230
      %p232 = scmp.ne.s32.totalorder %s224, %s226
      %p233 = scmp.eq.s32.totalorder %s38, 7
      %p234 = por %p232, %p233
      %p235 = scmp.ne.s32.totalorder %s226, %s227
      %p236 = scmp.eq.s32.totalorder %s38, 0
      %p237 = por %p235, %p236
      %p238 = scmp.ne.s32.totalorder %s226, %s227
      %p239 = scmp.eq.s32.totalorder %s39, 7
      %p240 = por %p238, %p239
      %p242 = scmp.ne.s32.totalorder %s227, %s241
      %p243 = scmp.eq.s32.totalorder %s39, 0
      %p244 = por %p242, %p243
      %s246 = sadd.s32 %s245, 1
      %p249 = scmp.eq.s32.totalorder %s33, 7
      %p250 = scmp.ne.s32.totalorder %s245, %s247
      %p251 = scmp.eq.s32.totalorder %s33, 0
      %p252 = por %p250, %p251
      %p253 = scmp.ne.s32.totalorder %s245, %s247
      %p254 = scmp.eq.s32.totalorder %s38, 7
      %p255 = por %p253, %p254
      %p256 = scmp.ne.s32.totalorder %s247, %s248
      %p257 = scmp.eq.s32.totalorder %s38, 0
      %p258 = por %p256, %p257
      %p259 = scmp.ne.s32.totalorder %s247, %s248
      %p260 = scmp.eq.s32.totalorder %s39, 7
      %p261 = por %p259, %p260
      %p263 = scmp.ne.s32.totalorder %s248, %s262
      %p264 = scmp.eq.s32.totalorder %s39, 0
      %p265 = por %p263, %p264
      %s267 = sadd.s32 %s266, 1
      %p270 = scmp.eq.s32.totalorder %s33, 7
      %p271 = scmp.ne.s32.totalorder %s266, %s268
      %p272 = scmp.eq.s32.totalorder %s33, 0
      %p273 = por %p271, %p272
      %p274 = scmp.ne.s32.totalorder %s266, %s268
      %p275 = scmp.eq.s32.totalorder %s38, 7
      %p276 = por %p274, %p275
      %p277 = scmp.ne.s32.totalorder %s268, %s269
      %p278 = scmp.eq.s32.totalorder %s38, 0
      %p279 = por %p277, %p278
      %p280 = scmp.ne.s32.totalorder %s268, %s269
      %p281 = scmp.eq.s32.totalorder %s39, 7
      %p282 = por %p280, %p281
      %p284 = scmp.ne.s32.totalorder %s269, %s283
      %p285 = scmp.eq.s32.totalorder %s39, 0
      %p286 = por %p284, %p285
      %s288 = sadd.s32 %s287, 1
      %p291 = scmp.eq.s32.totalorder %s33, 7
      %p292 = scmp.ne.s32.totalorder %s287, %s289
      %p293 = scmp.eq.s32.totalorder %s33, 0
      %p294 = por %p292, %p293
      %p295 = scmp.ne.s32.totalorder %s287, %s289
      %p296 = scmp.eq.s32.totalorder %s38, 7
      %p297 = por %p295, %p296
      %p298 = scmp.ne.s32.totalorder %s289, %s290
      %p299 = scmp.eq.s32.totalorder %s38, 0
      %p300 = por %p298, %p299
      %p301 = scmp.ne.s32.totalorder %s289, %s290
      %p302 = scmp.eq.s32.totalorder %s39, 7
      %p303 = por %p301, %p302
      %p305 = scmp.ne.s32.totalorder %s290, %s304
      %p306 = scmp.eq.s32.totalorder %s39, 0
      %p307 = por %p305, %p306
      %s308 = ssub.s32 %s40, %s59
      %s309 = ssub.s32 %s41, %s55
      %s310 = sor.u32 %s308, %s309
      %p311 = scmp.eq.s32.totalorder %s310, 0
      %s313 = sadd.s32 %s312, 1
      %s314 = scalar_select %p311, %s312, %s313
      %p317 = pneg %p311
      %p318 = scmp.eq.s32.totalorder %s33, 7
      %p319 = por %p317, %p318
      %p320 = scmp.ne.s32.totalorder %s312, %s315
      %p321 = scmp.eq.s32.totalorder %s33, 0
      %p322 = por %p320, %p321
      %p323 = scmp.ne.s32.totalorder %s312, %s315
      %p324 = scmp.eq.s32.totalorder %s38, 7
      %p325 = por %p323, %p324
      %p326 = scmp.ne.s32.totalorder %s315, %s316
      %p327 = scmp.eq.s32.totalorder %s38, 0
      %p328 = por %p326, %p327
      %p329 = scmp.ne.s32.totalorder %s315, %s316
      %p330 = scmp.eq.s32.totalorder %s39, 7
      %p331 = por %p329, %p330
      %p333 = scmp.ne.s32.totalorder %s316, %s332
      %p334 = scmp.eq.s32.totalorder %s39, 0
      %p335 = por %p333, %p334
      %s336 = ssub.s32 %s40, %s59
      %s337 = ssub.s32 %s41, %s55
      %s338 = sor.u32 %s336, %s337
      %p339 = scmp.eq.s32.totalorder %s338, 0
      %s341 = sadd.s32 %s340, 1
      %s342 = scalar_select %p339, %s340, %s341
      %p345 = pneg %p339
      %p346 = scmp.eq.s32.totalorder %s33, 7
      %p347 = por %p345, %p346
      %p348 = scmp.ne.s32.totalorder %s340, %s343
      %p349 = scmp.eq.s32.totalorder %s33, 0
      %p350 = por %p348, %p349
      %p351 = scmp.ne.s32.totalorder %s340, %s343
      %p352 = scmp.eq.s32.totalorder %s38, 7
      %p353 = por %p351, %p352
      %p354 = scmp.ne.s32.totalorder %s343, %s344
      %p355 = scmp.eq.s32.totalorder %s38, 0
      %p356 = por %p354, %p355
      %p357 = scmp.ne.s32.totalorder %s343, %s344
      %p358 = scmp.eq.s32.totalorder %s39, 7
      %p359 = por %p357, %p358
      %p361 = scmp.ne.s32.totalorder %s344, %s360
      %p362 = scmp.eq.s32.totalorder %s39, 0
      %p363 = por %p361, %p362
      %p364 = scmp.le.s32.totalorder 1, %s33
      %p365 = scmp.lt.s32.totalorder %s33, 9
      %p366 = pnand %p364, %p365
      %p367 = pneg %p366
      // Predicated region
      $region9: #{tpu_custom_call.1} parent=5 // pred_check
        _
      $region10: #{tpu_custom_call.1} parent=5 // pred_check_branch
        %369 = sbr.rel (%p366) target = $region12
      $region11: #{tpu_custom_call.1} parent=5 // pred_region
        %s370 = ssub.s32 %s33, 1
        // Predicated region
        $region13: #{tpu_custom_call.1} parent=11 // pred_check
          %p371 = pneg %p153
        $region14: #{tpu_custom_call.1} parent=11 // pred_check_branch
          %373 = sbr.rel (%p371) target = $region16
        $region15: #{tpu_custom_call.1} parent=11 // pred_region
          %s375 = ssub.s32 4096, 4096
          %376 = vsyncadd [#allocation13], %s375
          %s377 = sshll.u32 [#allocation12], 4
          %s378 = int_to_ptr.vmem [resolvable:$true] %s377
          %383 = dma.hbm_to_vmem [thread:$0]  %s3, 4096, %s378, [#allocation13], 256, 256, 16
        $region16: #{tpu_custom_call.1} parent=11 // pred_fallthru
          _
        // Predicated region
        $region17: #{tpu_custom_call.1} parent=11 // pred_check
          %p384 = pneg %p174
        $region18: #{tpu_custom_call.1} parent=11 // pred_check_branch
          %386 = sbr.rel (%p384) target = $region20
        $region19: #{tpu_custom_call.1} parent=11 // pred_region
          _
        $region20: #{tpu_custom_call.1} parent=11 // pred_fallthru
          _
        // Predicated region
        $region21: #{tpu_custom_call.1} parent=11 // pred_check
          %p387 = pneg %p195
        $region22: #{tpu_custom_call.1} parent=11 // pred_check_branch
          %389 = sbr.rel (%p387) target = $region24
        $region23: #{tpu_custom_call.1} parent=11 // pred_region
          %s391 = ssub.s32 4096, 4096
          %392 = vsyncadd [#allocation13], %s391
          %s393 = sshll.u32 [#allocation14], 4
          %s394 = int_to_ptr.vmem [resolvable:$true] %s393
          %399 = dma.hbm_to_vmem [thread:$0]  %s5, 4096, %s394, [#allocation13], 256, 256, 16
        $region24: #{tpu_custom_call.1} parent=11 // pred_fallthru
          _
        // Predicated region
        $region25: #{tpu_custom_call.1} parent=11 // pred_check
          %p400 = pneg %p216
        $region26: #{tpu_custom_call.1} parent=11 // pred_check_branch
          %402 = sbr.rel (%p400) target = $region28
        $region27: #{tpu_custom_call.1} parent=11 // pred_region
          _
        $region28: #{tpu_custom_call.1} parent=11 // pred_fallthru
          _
        // Predicated region
        $region29: #{tpu_custom_call.1} parent=11 // pred_check
          %p403 = pneg %p237
        $region30: #{tpu_custom_call.1} parent=11 // pred_check_branch
          %405 = sbr.rel (%p403) target = $region32
        $region31: #{tpu_custom_call.1} parent=11 // pred_region
          %s407 = ssub.s32 4096, 4096
          %408 = vsyncadd [#allocation16], %s407
          %s409 = sshll.u32 [#allocation15], 4
          %s410 = int_to_ptr.vmem [resolvable:$true] %s409
          %415 = dma.hbm_to_vmem [thread:$0]  %s7, 4096, %s410, [#allocation16], 256, 256, 16
        $region32: #{tpu_custom_call.1} parent=11 // pred_fallthru
          _
        // Predicated region
        $region33: #{tpu_custom_call.1} parent=11 // pred_check
          %p416 = pneg %p258
        $region34: #{tpu_custom_call.1} parent=11 // pred_check_branch
          %418 = sbr.rel (%p416) target = $region36
        $region35: #{tpu_custom_call.1} parent=11 // pred_region
          _
        $region36: #{tpu_custom_call.1} parent=11 // pred_fallthru
          _
        // Predicated region
        $region37: #{tpu_custom_call.1} parent=11 // pred_check
          %p419 = pneg %p279
        $region38: #{tpu_custom_call.1} parent=11 // pred_check_branch
          %421 = sbr.rel (%p419) target = $region40
        $region39: #{tpu_custom_call.1} parent=11 // pred_region
          %s423 = ssub.s32 4096, 4096
          %424 = vsyncadd [#allocation16], %s423
          %s425 = sshll.u32 [#allocation17], 4
          %s426 = int_to_ptr.vmem [resolvable:$true] %s425
          %431 = dma.hbm_to_vmem [thread:$0]  %s9, 4096, %s426, [#allocation16], 64, 64, 4
        $region40: #{tpu_custom_call.1} parent=11 // pred_fallthru
          _
        // Predicated region
        $region41: #{tpu_custom_call.1} parent=11 // pred_check
          %p432 = pneg %p300
        $region42: #{tpu_custom_call.1} parent=11 // pred_check_branch
          %434 = sbr.rel (%p432) target = $region44
        $region43: #{tpu_custom_call.1} parent=11 // pred_region
          _
        $region44: #{tpu_custom_call.1} parent=11 // pred_fallthru
          _
      $region12: #{tpu_custom_call.1} parent=5 // pred_fallthru
        _
      %p435 = scmp.lt.s32.totalorder %s33, 8
      // Predicated region
      $region45: #{tpu_custom_call.1} parent=5 // pred_check
        %p436 = pneg %p435
      $region46: #{tpu_custom_call.1} parent=5 // pred_check_branch
        %438 = sbr.rel (%p436) target = $region48
      $region47: #{tpu_custom_call.1} parent=5 // pred_region
        // Predicated region
        $region49: #{tpu_custom_call.1} parent=47 // pred_check
          %p439 = pneg %p74
        $region50: #{tpu_custom_call.1} parent=47 // pred_check_branch
          %441 = sbr.rel (%p439) target = $region52
        $region51: #{tpu_custom_call.1} parent=47 // pred_region
          %s442 = sand.u32 %s64, 1
          %s443 = scalar_lea.sflag [#allocation7], %s442
          %s444 = sand.u32 %s64, 1
          %s445 = smul.addr %s444, 4
          %s446 = scalar_lea.vmem [#allocation6], %s445
          %s448 = ssub.s32 64, 64
          %449 = vsyncadd %s443, %s448
          %s450 = sadd.s32 %s41, %s40
          %s451 = smul.addr %s450, 64
          %s452 = scalar_lea.hbm %s0, %s451
          %s454 = sshll.u32 %s446, 4
          %s455 = int_to_ptr.vmem [resolvable:$true] %s454
          %457 = dma.hbm_to_vmem [thread:$0]  %s452, 64, %s455, %s443
        $region52: #{tpu_custom_call.1} parent=47 // pred_fallthru
          _
        // Predicated region
        $region53: #{tpu_custom_call.1} parent=47 // pred_check
          %p458 = pneg %p100
        $region54: #{tpu_custom_call.1} parent=47 // pred_check_branch
          %460 = sbr.rel (%p458) target = $region56
        $region55: #{tpu_custom_call.1} parent=47 // pred_region
          %s461 = sand.u32 %s33, 1
          %s462 = scalar_lea.sflag [#allocation10], %s461
          %s463 = sand.u32 %s90, 1
          %s464 = smul.addr %s463, 4
          %s465 = scalar_lea.vmem [#allocation9], %s464
          %s467 = ssub.s32 64, 64
          %468 = vsyncadd %s462, %s467
          %s469 = smul.addr %s40, 64
          %s470 = scalar_lea.hbm %s1, %s469
          %s472 = sshll.u32 %s465, 4
          %s473 = int_to_ptr.vmem [resolvable:$true] %s472
          %475 = dma.hbm_to_vmem [thread:$0]  %s470, 64, %s473, %s462
        $region56: #{tpu_custom_call.1} parent=47 // pred_fallthru
          _
        // Predicated region
        $region57: #{tpu_custom_call.1} parent=47 // pred_check
          %p476 = pneg %p126
        $region58: #{tpu_custom_call.1} parent=47 // pred_check_branch
          %478 = sbr.rel (%p476) target = $region60
        $region59: #{tpu_custom_call.1} parent=47 // pred_region
          %s479 = sand.u32 %s33, 1
          %s480 = scalar_lea.sflag [#allocation10], %s479
          %s481 = sand.u32 %s116, 1
          %s482 = smul.addr %s481, 4
          %s483 = scalar_lea.vmem [#allocation11], %s482
          %s485 = ssub.s32 64, 64
          %486 = vsyncadd %s480, %s485
          %s487 = smul.addr %s40, 64
          %s488 = scalar_lea.hbm %s2, %s487
          %s490 = sshll.u32 %s483, 4
          %s491 = int_to_ptr.vmem [resolvable:$true] %s490
          %493 = dma.hbm_to_vmem [thread:$0]  %s488, 64, %s491, %s480
        $region60: #{tpu_custom_call.1} parent=47 // pred_fallthru
          _
      $region48: #{tpu_custom_call.1} parent=5 // pred_fallthru
        _
      %p494 = scmp.le.s32.totalorder 1, %s33
      %p495 = scmp.lt.s32.totalorder %s33, 9
      %p496 = pnand %p494, %p495
      %p497 = pneg %p496
      // Predicated region
      $region61: #{tpu_custom_call.1} parent=5 // pred_check
        _
      $region62: #{tpu_custom_call.1} parent=5 // pred_check_branch
        %499 = sbr.rel (%p496) target = $region64
      $region63: #{tpu_custom_call.1} parent=5 // pred_region
        %s500 = ssub.s32 %s33, 1
        %s501 = sand.u32 %s67, 1
        %s502 = scalar_lea.sflag [#allocation7], %s501
        %s503 = sand.u32 %s67, 1
        %s504 = smul.addr %s503, 4
        %s505 = scalar_lea.vmem [#allocation6], %s504
        // Predicated region
        $region65: #{tpu_custom_call.1} parent=63 // pred_check
          %p506 = pneg %p80
        $region66: #{tpu_custom_call.1} parent=63 // pred_check_branch
          %508 = sbr.rel (%p506) target = $region68
        $region67: #{tpu_custom_call.1} parent=63 // pred_region
          %509 = dma.done %s502, 64
        $region68: #{tpu_custom_call.1} parent=63 // pred_fallthru
          _
        %s510 = sand.u32 %s38, 1
        %s511 = scalar_lea.sflag [#allocation10], %s510
        %s512 = sand.u32 %s93, 1
        %s513 = smul.addr %s512, 4
        %s514 = scalar_lea.vmem [#allocation9], %s513
        // Predicated region
        $region69: #{tpu_custom_call.1} parent=63 // pred_check
          %p515 = pneg %p106
        $region70: #{tpu_custom_call.1} parent=63 // pred_check_branch
          %517 = sbr.rel (%p515) target = $region72
        $region71: #{tpu_custom_call.1} parent=63 // pred_region
          %518 = dma.done %s511, 64
        $region72: #{tpu_custom_call.1} parent=63 // pred_fallthru
          _
        %s519 = sand.u32 %s38, 1
        %s520 = scalar_lea.sflag [#allocation10], %s519
        %s521 = sand.u32 %s119, 1
        %s522 = smul.addr %s521, 4
        %s523 = scalar_lea.vmem [#allocation11], %s522
        // Predicated region
        $region73: #{tpu_custom_call.1} parent=63 // pred_check
          %p524 = pneg %p132
        $region74: #{tpu_custom_call.1} parent=63 // pred_check_branch
          %526 = sbr.rel (%p524) target = $region76
        $region75: #{tpu_custom_call.1} parent=63 // pred_region
          %527 = dma.done %s520, 64
        $region76: #{tpu_custom_call.1} parent=63 // pred_fallthru
          _
        // Predicated region
        $region77: #{tpu_custom_call.1} parent=63 // pred_check
          %p528 = pneg %p153
        $region78: #{tpu_custom_call.1} parent=63 // pred_check_branch
          %530 = sbr.rel (%p528) target = $region80
        $region79: #{tpu_custom_call.1} parent=63 // pred_region
          %531 = dma.done [#allocation13], 4096
        $region80: #{tpu_custom_call.1} parent=63 // pred_fallthru
          _
        // Predicated region
        $region81: #{tpu_custom_call.1} parent=63 // pred_check
          %p532 = pneg %p195
        $region82: #{tpu_custom_call.1} parent=63 // pred_check_branch
          %534 = sbr.rel (%p532) target = $region84
        $region83: #{tpu_custom_call.1} parent=63 // pred_region
          %535 = dma.done [#allocation13], 4096
        $region84: #{tpu_custom_call.1} parent=63 // pred_fallthru
          _
        // Predicated region
        $region85: #{tpu_custom_call.1} parent=63 // pred_check
          %p536 = pneg %p237
        $region86: #{tpu_custom_call.1} parent=63 // pred_check_branch
          %538 = sbr.rel (%p536) target = $region88
        $region87: #{tpu_custom_call.1} parent=63 // pred_region
          %539 = dma.done [#allocation16], 4096
        $region88: #{tpu_custom_call.1} parent=63 // pred_fallthru
          _
        // Predicated region
        $region89: #{tpu_custom_call.1} parent=63 // pred_check
          %p540 = pneg %p279
        $region90: #{tpu_custom_call.1} parent=63 // pred_check_branch
          %542 = sbr.rel (%p540) target = $region92
        $region91: #{tpu_custom_call.1} parent=63 // pred_region
          %543 = dma.done [#allocation16], 4096
        $region92: #{tpu_custom_call.1} parent=63 // pred_fallthru
          _
        %s544 = sand.u32 %s67, 1
        %s545 = scalar_lea.sflag [#allocation7], %s544
        %s546 = sand.u32 %s67, 1
        %s547 = smul.addr %s546, 4
        %s548 = scalar_lea.vmem [#allocation6], %s547
        %p549 = pneg %p80
        %p550 = pneg %p77
        %s551 = sand.u32 %s38, 1
        %s552 = scalar_lea.sflag [#allocation10], %s551
        %s553 = sand.u32 %s93, 1
        %s554 = smul.addr %s553, 4
        %s555 = scalar_lea.vmem [#allocation9], %s554
        %p556 = pneg %p106
        %p557 = pneg %p103
        %s558 = sand.u32 %s38, 1
        %s559 = scalar_lea.sflag [#allocation10], %s558
        %s560 = sand.u32 %s119, 1
        %s561 = smul.addr %s560, 4
        %s562 = scalar_lea.vmem [#allocation11], %s561
        %p563 = pneg %p132
        %p564 = pneg %p129
        %p565 = pneg %p153
        %p566 = pneg %p150
        %p567 = pneg %p174
        %p568 = pneg %p171
        %p569 = pneg %p195
        %p570 = pneg %p192
        %p571 = pneg %p216
        %p572 = pneg %p213
        %p573 = pneg %p237
        %p574 = pneg %p234
        %p575 = pneg %p258
        %p576 = pneg %p255
        %p577 = pneg %p279
        %p578 = pneg %p276
        %p579 = pneg %p300
        %p580 = pneg %p297
        %p581 = pneg %p328
        %p582 = pneg %p325
        %s583 = sand.u32 %s315, 1
        %s584 = scalar_lea.sflag [#allocation8], %s583
        %s585 = sand.u32 %s315, 1
        %s586 = smul.addr %s585, 8
        %s587 = scalar_lea.vmem [#allocation18], %s586
        %p588 = pneg %p356
        %p589 = pneg %p353
        %s590 = sand.u32 %s343, 1
        %s591 = scalar_lea.sflag [#allocation20], %s590
        %s592 = sand.u32 %s343, 1
        %s593 = smul.addr %s592, 32
        %s594 = scalar_lea.vmem [#allocation19], %s593
        %p596 = scmp.eq.s32.totalorder %s44, 0
        %p597 = scmp.eq.s32.totalorder %s45, 0
        %p598 = pnand %p596, %p597
        %p599 = pneg %p598
        // Predicated region
        $region93: #{tpu_custom_call.1} parent=63 // pred_check
          _
        $region94: #{tpu_custom_call.1} parent=63 // pred_check_branch
          %601 = sbr.rel (%p598) target = $region96
        $region95: #{tpu_custom_call.1} parent=63 // pred_region
          %v602 = vld [vmem:[%s514] sm:$0xf]
          %v603 = vld [vmem:[%s523] sm:$0xf]
          %v604 = vld [vmem:[#allocation14] sm:$0xff]
          %v605 = vld [vmem:[#allocation14 + $0x8] sm:$0xff]
          %v606 = vld [vmem:[#allocation14 + $0x10] sm:$0xff]
          %v607 = vld [vmem:[#allocation14 + $0x18] sm:$0xff]
          %v608 = vld [vmem:[#allocation14 + $0x20] sm:$0xff]
          %v609 = vld [vmem:[#allocation14 + $0x28] sm:$0xff]
          %v610 = vld [vmem:[#allocation14 + $0x30] sm:$0xff]
          %v611 = vld [vmem:[#allocation14 + $0x38] sm:$0xff]
          %v612 = vld [vmem:[#allocation14 + $0x40] sm:$0xff]
          %v613 = vld [vmem:[#allocation14 + $0x48] sm:$0xff]
          %v614 = vld [vmem:[#allocation14 + $0x50] sm:$0xff]
          %v615 = vld [vmem:[#allocation14 + $0x58] sm:$0xff]
          %v616 = vld [vmem:[#allocation14 + $0x60] sm:$0xff]
          %v617 = vld [vmem:[#allocation14 + $0x68] sm:$0xff]
          %v618 = vld [vmem:[#allocation14 + $0x70] sm:$0xff]
          %v619 = vld [vmem:[#allocation14 + $0x78] sm:$0xff]
          %v620 = vld [vmem:[#allocation14 + $0x80] sm:$0xff]
          %v621 = vld [vmem:[#allocation14 + $0x88] sm:$0xff]
          %v622 = vld [vmem:[#allocation14 + $0x90] sm:$0xff]
          %v623 = vld [vmem:[#allocation14 + $0x98] sm:$0xff]
          %v624 = vld [vmem:[#allocation14 + $0xa0] sm:$0xff]
          %v625 = vld [vmem:[#allocation14 + $0xa8] sm:$0xff]
          %v626 = vld [vmem:[#allocation14 + $0xb0] sm:$0xff]
          %v627 = vld [vmem:[#allocation14 + $0xb8] sm:$0xff]
          %v628 = vld [vmem:[#allocation14 + $0xc0] sm:$0xff]
          %v629 = vld [vmem:[#allocation14 + $0xc8] sm:$0xff]
          %v630 = vld [vmem:[#allocation14 + $0xd0] sm:$0xff]
          %v631 = vld [vmem:[#allocation14 + $0xd8] sm:$0xff]
          %v632 = vld [vmem:[#allocation14 + $0xe0] sm:$0xff]
          %v633 = vld [vmem:[#allocation14 + $0xe8] sm:$0xff]
          %v634 = vld [vmem:[#allocation14 + $0xf0] sm:$0xff]
          %v635 = vld [vmem:[#allocation14 + $0xf8] sm:$0xff]
          %v636 = vld [vmem:[%s6] sm:$0xf]
          %v638 = vlaneseq
          %v639 = vshrl.u32 %v638, 7
          %v640 = vsub.s32 0, %v639
          %v641 = vrot.slane %v636, %v640
          %v642 = vlaneseq
          %v643 = vshrl.u32 %v642, 7
          %v644 = vsub.s32 1, %v643
          %v645 = vrot.slane %v636, %v644
          %v646 = vlaneseq
          %v647 = vshrl.u32 %v646, 7
          %v648 = vsub.s32 2, %v647
          %v649 = vrot.slane %v636, %v648
          %v650 = vlaneseq
          %v651 = vshrl.u32 %v650, 7
          %v652 = vsub.s32 3, %v651
          %v653 = vrot.slane %v636, %v652
          %v690 = vunpack.c.l.b16 %v604
          %v691 = vunpack.c.h.b16 %v604
          %v692 = vunpack.c.l.b16 %v605
          %v693 = vunpack.c.h.b16 %v605
          %v694 = vunpack.c.l.b16 %v606
          %v695 = vunpack.c.h.b16 %v606
          %v696 = vunpack.c.l.b16 %v607
          %v697 = vunpack.c.h.b16 %v607
          %v698 = vunpack.c.l.b16 %v608
          %v699 = vunpack.c.h.b16 %v608
          %v700 = vunpack.c.l.b16 %v609
          %v701 = vunpack.c.h.b16 %v609
          %v702 = vunpack.c.l.b16 %v610
          %v703 = vunpack.c.h.b16 %v610
          %v704 = vunpack.c.l.b16 %v611
          %v705 = vunpack.c.h.b16 %v611
          %v706 = vunpack.c.l.b16 %v612
          %v707 = vunpack.c.h.b16 %v612
          %v708 = vunpack.c.l.b16 %v613
          %v709 = vunpack.c.h.b16 %v613
          %v710 = vunpack.c.l.b16 %v614
          %v711 = vunpack.c.h.b16 %v614
          %v712 = vunpack.c.l.b16 %v615
          %v713 = vunpack.c.h.b16 %v615
          %v714 = vunpack.c.l.b16 %v616
          %v715 = vunpack.c.h.b16 %v616
          %v716 = vunpack.c.l.b16 %v617
          %v717 = vunpack.c.h.b16 %v617
          %v718 = vunpack.c.l.b16 %v618
          %v719 = vunpack.c.h.b16 %v618
          %v720 = vunpack.c.l.b16 %v619
          %v721 = vunpack.c.h.b16 %v619
          %v722 = vunpack.c.l.b16 %v620
          %v723 = vunpack.c.h.b16 %v620
          %v724 = vunpack.c.l.b16 %v621
          %v725 = vunpack.c.h.b16 %v621
          %v726 = vunpack.c.l.b16 %v622
          %v727 = vunpack.c.h.b16 %v622
          %v728 = vunpack.c.l.b16 %v623
          %v729 = vunpack.c.h.b16 %v623
          %v730 = vunpack.c.l.b16 %v624
          %v731 = vunpack.c.h.b16 %v624
          %v732 = vunpack.c.l.b16 %v625
          %v733 = vunpack.c.h.b16 %v625
          %v734 = vunpack.c.l.b16 %v626
          %v735 = vunpack.c.h.b16 %v626
          %v736 = vunpack.c.l.b16 %v627
          %v737 = vunpack.c.h.b16 %v627
          %v738 = vunpack.c.l.b16 %v628
          %v739 = vunpack.c.h.b16 %v628
          %v740 = vunpack.c.l.b16 %v629
          %v741 = vunpack.c.h.b16 %v629
          %v742 = vunpack.c.l.b16 %v630
          %v743 = vunpack.c.h.b16 %v630
          %v744 = vunpack.c.l.b16 %v631
          %v745 = vunpack.c.h.b16 %v631
          %v746 = vunpack.c.l.b16 %v632
          %v747 = vunpack.c.h.b16 %v632
          %v748 = vunpack.c.l.b16 %v633
          %v749 = vunpack.c.h.b16 %v633
          %v750 = vunpack.c.l.b16 %v634
          %v751 = vunpack.c.h.b16 %v634
          %v752 = vunpack.c.l.b16 %v635
          %v753 = vunpack.c.h.b16 %v635
          %v754 = vpack.c.b16 %v694, %v690
          %v755 = vpack.c.b16 %v695, %v691
          %v756 = vpack.c.b16 %v696, %v692
          %v757 = vpack.c.b16 %v697, %v693
          %v758 = vpack.c.b16 %v702, %v698
          %v759 = vpack.c.b16 %v703, %v699
          %v760 = vpack.c.b16 %v704, %v700
          %v761 = vpack.c.b16 %v705, %v701
          %v762 = vpack.c.b16 %v710, %v706
          %v763 = vpack.c.b16 %v711, %v707
          %v764 = vpack.c.b16 %v712, %v708
          %v765 = vpack.c.b16 %v713, %v709
          %v766 = vpack.c.b16 %v718, %v714
          %v767 = vpack.c.b16 %v719, %v715
          %v768 = vpack.c.b16 %v720, %v716
          %v769 = vpack.c.b16 %v721, %v717
          %v770 = vpack.c.b16 %v726, %v722
          %v771 = vpack.c.b16 %v727, %v723
          %v772 = vpack.c.b16 %v728, %v724
          %v773 = vpack.c.b16 %v729, %v725
          %v774 = vpack.c.b16 %v734, %v730
          %v775 = vpack.c.b16 %v735, %v731
          %v776 = vpack.c.b16 %v736, %v732
          %v777 = vpack.c.b16 %v737, %v733
          %v778 = vpack.c.b16 %v742, %v738
          %v779 = vpack.c.b16 %v743, %v739
          %v780 = vpack.c.b16 %v744, %v740
          %v781 = vpack.c.b16 %v745, %v741
          %v782 = vpack.c.b16 %v750, %v746
          %v783 = vpack.c.b16 %v751, %v747
          %v784 = vpack.c.b16 %v752, %v748
          %v785 = vpack.c.b16 %v753, %v749
          %818 = vmatprep.subr.bf16.mxu0 %v783
          %819 = vmatpush1.bf16.msra.mxu0 %v782
          %820 = vmatprep.subr.bf16.mxu0 %v779
          %821 = vmatpush1.bf16.msra.mxu0 %v778
          %822 = vmatprep.subr.bf16.mxu0 %v775
          %823 = vmatpush1.bf16.msra.mxu0 %v774
          %824 = vmatprep.subr.bf16.mxu0 %v771
          %825 = vmatpush1.bf16.msra.mxu0 %v770
          %826 = vmatprep.subr.bf16.mxu0 %v767
          %827 = vmatpush1.bf16.msra.mxu0 %v766
          %828 = vmatprep.subr.bf16.mxu0 %v763
          %829 = vmatpush1.bf16.msra.mxu0 %v762
          %830 = vmatprep.subr.bf16.mxu0 %v759
          %831 = vmatpush1.bf16.msra.mxu0 %v758
          %832 = vmatprep.subr.bf16.mxu0 %v755
          %833 = vmatpush1.bf16.msra.mxu0 %v754
          %834 = vmatprep.subr.bf16.mxu0 0
          %835 = vmatpush2.bf16.msra.mxu0 0
          %836 = vmatprep.subr.bf16.mxu0 0
          %837 = vmatpush2.bf16.msra.mxu0 0
          %838 = vmatprep.subr.bf16.mxu0 0
          %839 = vmatpush2.bf16.msra.mxu0 0
          %840 = vmatprep.subr.bf16.mxu0 0
          %841 = vmatpush2.bf16.msra.mxu0 0
          %842 = vmatprep.subr.bf16.mxu0 0
          %843 = vmatpush2.bf16.msra.mxu0 0
          %844 = vmatprep.subr.bf16.mxu0 0
          %845 = vmatpush2.bf16.msra.mxu0 0
          %846 = vmatprep.subr.bf16.mxu0 0
          %847 = vmatpush2.bf16.msra.mxu0 0
          %848 = vmatprep.subr.bf16.mxu0 0
          %849 = vmatpush2.bf16.msra.mxu0 0
          %850 = vmatprep.mubr.bf16.mxu0 0
          %851 = vmatmul.mubr.bf16.gmra.mxu0 %v602
          %v852 = vpop.f32.mrf.mxu0
          %v853 = vadd.f32 %v641, %v852
          %v854 = vpop.f32.mrf.mxu0
          %v855 = vadd.f32 %v645, %v854
          %v856 = vpop.f32.mrf.mxu0
          %v857 = vpop.f32.mrf.mxu0
          %858 = vdwg.mxu0
          %859 = vmatprep.subr.bf16.mxu0 %v785
          %860 = vmatpush1.bf16.msra.mxu0 %v784
          %861 = vmatprep.subr.bf16.mxu0 %v781
          %862 = vmatpush1.bf16.msra.mxu0 %v780
          %863 = vmatprep.subr.bf16.mxu0 %v777
          %864 = vmatpush1.bf16.msra.mxu0 %v776
          %865 = vmatprep.subr.bf16.mxu0 %v773
          %866 = vmatpush1.bf16.msra.mxu0 %v772
          %867 = vmatprep.subr.bf16.mxu0 %v769
          %868 = vmatpush1.bf16.msra.mxu0 %v768
          %869 = vmatprep.subr.bf16.mxu0 %v765
          %870 = vmatpush1.bf16.msra.mxu0 %v764
          %871 = vmatprep.subr.bf16.mxu0 %v761
          %872 = vmatpush1.bf16.msra.mxu0 %v760
          %873 = vmatprep.subr.bf16.mxu0 %v757
          %874 = vmatpush1.bf16.msra.mxu0 %v756
          %875 = vmatprep.subr.bf16.mxu0 0
          %876 = vmatpush2.bf16.msra.mxu0 0
          %877 = vmatprep.subr.bf16.mxu0 0
          %878 = vmatpush2.bf16.msra.mxu0 0
          %879 = vmatprep.subr.bf16.mxu0 0
          %880 = vmatpush2.bf16.msra.mxu0 0
          %881 = vmatprep.subr.bf16.mxu0 0
          %882 = vmatpush2.bf16.msra.mxu0 0
          %883 = vmatprep.subr.bf16.mxu0 0
          %884 = vmatpush2.bf16.msra.mxu0 0
          %885 = vmatprep.subr.bf16.mxu0 0
          %886 = vmatpush2.bf16.msra.mxu0 0
          %887 = vmatprep.subr.bf16.mxu0 0
          %888 = vmatpush2.bf16.msra.mxu0 0
          %889 = vmatprep.subr.bf16.mxu0 0
          %890 = vmatpush2.bf16.msra.mxu0 0
          %891 = vmatprep.mubr.bf16.mxu0 0
          %892 = vmatmul.mubr.bf16.gmra.mxu0 %v602
          %v893 = vpop.f32.mrf.mxu0
          %v894 = vadd.f32 %v649, %v893
          %v895 = vpop.f32.mrf.mxu0
          %v896 = vadd.f32 %v653, %v895
          %v897 = vpop.f32.mrf.mxu0
          %v898 = vpop.f32.mrf.mxu0
          %899 = vdwg.mxu0
          %v900 = vpack.c.bf16 %v853, %v853
          %v901 = vpack.c.bf16 %v855, %v855
          %v902 = vpack.c.bf16 %v894, %v894
          %v903 = vpack.c.bf16 %v896, %v896
          %v904 = vld [vmem:[#allocation15] sm:$0xff]
          %v905 = vld [vmem:[#allocation15 + $0x8] sm:$0xff]
          %v906 = vld [vmem:[#allocation15 + $0x10] sm:$0xff]
          %v907 = vld [vmem:[#allocation15 + $0x18] sm:$0xff]
          %v908 = vld [vmem:[#allocation15 + $0x20] sm:$0xff]
          %v909 = vld [vmem:[#allocation15 + $0x28] sm:$0xff]
          %v910 = vld [vmem:[#allocation15 + $0x30] sm:$0xff]
          %v911 = vld [vmem:[#allocation15 + $0x38] sm:$0xff]
          %v912 = vld [vmem:[#allocation15 + $0x40] sm:$0xff]
          %v913 = vld [vmem:[#allocation15 + $0x48] sm:$0xff]
          %v914 = vld [vmem:[#allocation15 + $0x50] sm:$0xff]
          %v915 = vld [vmem:[#allocation15 + $0x58] sm:$0xff]
          %v916 = vld [vmem:[#allocation15 + $0x60] sm:$0xff]
          %v917 = vld [vmem:[#allocation15 + $0x68] sm:$0xff]
          %v918 = vld [vmem:[#allocation15 + $0x70] sm:$0xff]
          %v919 = vld [vmem:[#allocation15 + $0x78] sm:$0xff]
          %v920 = vld [vmem:[#allocation15 + $0x80] sm:$0xff]
          %v921 = vld [vmem:[#allocation15 + $0x88] sm:$0xff]
          %v922 = vld [vmem:[#allocation15 + $0x90] sm:$0xff]
          %v923 = vld [vmem:[#allocation15 + $0x98] sm:$0xff]
          %v924 = vld [vmem:[#allocation15 + $0xa0] sm:$0xff]
          %v925 = vld [vmem:[#allocation15 + $0xa8] sm:$0xff]
          %v926 = vld [vmem:[#allocation15 + $0xb0] sm:$0xff]
          %v927 = vld [vmem:[#allocation15 + $0xb8] sm:$0xff]
          %v928 = vld [vmem:[#allocation15 + $0xc0] sm:$0xff]
          %v929 = vld [vmem:[#allocation15 + $0xc8] sm:$0xff]
          %v930 = vld [vmem:[#allocation15 + $0xd0] sm:$0xff]
          %v931 = vld [vmem:[#allocation15 + $0xd8] sm:$0xff]
          %v932 = vld [vmem:[#allocation15 + $0xe0] sm:$0xff]
          %v933 = vld [vmem:[#allocation15 + $0xe8] sm:$0xff]
          %v934 = vld [vmem:[#allocation15 + $0xf0] sm:$0xff]
          %v935 = vld [vmem:[#allocation15 + $0xf8] sm:$0xff]
          %v936 = vld [vmem:[%s8] sm:$0xf]
          %v938 = vlaneseq
          %v939 = vshrl.u32 %v938, 7
          %v940 = vsub.s32 0, %v939
          %v941 = vrot.slane %v936, %v940
          %v942 = vlaneseq
          %v943 = vshrl.u32 %v942, 7
          %v944 = vsub.s32 1, %v943
          %v945 = vrot.slane %v936, %v944
          %v946 = vlaneseq
          %v947 = vshrl.u32 %v946, 7
          %v948 = vsub.s32 2, %v947
          %v949 = vrot.slane %v936, %v948
          %v950 = vlaneseq
          %v951 = vshrl.u32 %v950, 7
          %v952 = vsub.s32 3, %v951
          %v953 = vrot.slane %v936, %v952
          %v990 = vunpack.c.l.b16 %v904
          %v991 = vunpack.c.h.b16 %v904
          %v992 = vunpack.c.l.b16 %v905
          %v993 = vunpack.c.h.b16 %v905
          %v994 = vunpack.c.l.b16 %v906
          %v995 = vunpack.c.h.b16 %v906
          %v996 = vunpack.c.l.b16 %v907
          %v997 = vunpack.c.h.b16 %v907
          %v998 = vunpack.c.l.b16 %v908
          %v999 = vunpack.c.h.b16 %v908
          %v1000 = vunpack.c.l.b16 %v909
          %v1001 = vunpack.c.h.b16 %v909
          %v1002 = vunpack.c.l.b16 %v910
          %v1003 = vunpack.c.h.b16 %v910
          %v1004 = vunpack.c.l.b16 %v911
          %v1005 = vunpack.c.h.b16 %v911
          %v1006 = vunpack.c.l.b16 %v912
          %v1007 = vunpack.c.h.b16 %v912
          %v1008 = vunpack.c.l.b16 %v913
          %v1009 = vunpack.c.h.b16 %v913
          %v1010 = vunpack.c.l.b16 %v914
          %v1011 = vunpack.c.h.b16 %v914
          %v1012 = vunpack.c.l.b16 %v915
          %v1013 = vunpack.c.h.b16 %v915
          %v1014 = vunpack.c.l.b16 %v916
          %v1015 = vunpack.c.h.b16 %v916
          %v1016 = vunpack.c.l.b16 %v917
          %v1017 = vunpack.c.h.b16 %v917
          %v1018 = vunpack.c.l.b16 %v918
          %v1019 = vunpack.c.h.b16 %v918
          %v1020 = vunpack.c.l.b16 %v919
          %v1021 = vunpack.c.h.b16 %v919
          %v1022 = vunpack.c.l.b16 %v920
          %v1023 = vunpack.c.h.b16 %v920
          %v1024 = vunpack.c.l.b16 %v921
          %v1025 = vunpack.c.h.b16 %v921
          %v1026 = vunpack.c.l.b16 %v922
          %v1027 = vunpack.c.h.b16 %v922
          %v1028 = vunpack.c.l.b16 %v923
          %v1029 = vunpack.c.h.b16 %v923
          %v1030 = vunpack.c.l.b16 %v924
          %v1031 = vunpack.c.h.b16 %v924
          %v1032 = vunpack.c.l.b16 %v925
          %v1033 = vunpack.c.h.b16 %v925
          %v1034 = vunpack.c.l.b16 %v926
          %v1035 = vunpack.c.h.b16 %v926
          %v1036 = vunpack.c.l.b16 %v927
          %v1037 = vunpack.c.h.b16 %v927
          %v1038 = vunpack.c.l.b16 %v928
          %v1039 = vunpack.c.h.b16 %v928
          %v1040 = vunpack.c.l.b16 %v929
          %v1041 = vunpack.c.h.b16 %v929
          %v1042 = vunpack.c.l.b16 %v930
          %v1043 = vunpack.c.h.b16 %v930
          %v1044 = vunpack.c.l.b16 %v931
          %v1045 = vunpack.c.h.b16 %v931
          %v1046 = vunpack.c.l.b16 %v932
          %v1047 = vunpack.c.h.b16 %v932
          %v1048 = vunpack.c.l.b16 %v933
          %v1049 = vunpack.c.h.b16 %v933
          %v1050 = vunpack.c.l.b16 %v934
          %v1051 = vunpack.c.h.b16 %v934
          %v1052 = vunpack.c.l.b16 %v935
          %v1053 = vunpack.c.h.b16 %v935
          %v1054 = vpack.c.b16 %v994, %v990
          %v1055 = vpack.c.b16 %v995, %v991
          %v1056 = vpack.c.b16 %v996, %v992
          %v1057 = vpack.c.b16 %v997, %v993
          %v1058 = vpack.c.b16 %v1002, %v998
          %v1059 = vpack.c.b16 %v1003, %v999
          %v1060 = vpack.c.b16 %v1004, %v1000
          %v1061 = vpack.c.b16 %v1005, %v1001
          %v1062 = vpack.c.b16 %v1010, %v1006
          %v1063 = vpack.c.b16 %v1011, %v1007
          %v1064 = vpack.c.b16 %v1012, %v1008
          %v1065 = vpack.c.b16 %v1013, %v1009
          %v1066 = vpack.c.b16 %v1018, %v1014
          %v1067 = vpack.c.b16 %v1019, %v1015
          %v1068 = vpack.c.b16 %v1020, %v1016
          %v1069 = vpack.c.b16 %v1021, %v1017
          %v1070 = vpack.c.b16 %v1026, %v1022
          %v1071 = vpack.c.b16 %v1027, %v1023
          %v1072 = vpack.c.b16 %v1028, %v1024
          %v1073 = vpack.c.b16 %v1029, %v1025
          %v1074 = vpack.c.b16 %v1034, %v1030
          %v1075 = vpack.c.b16 %v1035, %v1031
          %v1076 = vpack.c.b16 %v1036, %v1032
          %v1077 = vpack.c.b16 %v1037, %v1033
          %v1078 = vpack.c.b16 %v1042, %v1038
          %v1079 = vpack.c.b16 %v1043, %v1039
          %v1080 = vpack.c.b16 %v1044, %v1040
          %v1081 = vpack.c.b16 %v1045, %v1041
          %v1082 = vpack.c.b16 %v1050, %v1046
          %v1083 = vpack.c.b16 %v1051, %v1047
          %v1084 = vpack.c.b16 %v1052, %v1048
          %v1085 = vpack.c.b16 %v1053, %v1049
          %1118 = vmatprep.subr.bf16.mxu0 %v1083
          %1119 = vmatpush1.bf16.msra.mxu0 %v1082
          %1120 = vmatprep.subr.bf16.mxu0 %v1079
          %1121 = vmatpush1.bf16.msra.mxu0 %v1078
          %1122 = vmatprep.subr.bf16.mxu0 %v1075
          %1123 = vmatpush1.bf16.msra.mxu0 %v1074
          %1124 = vmatprep.subr.bf16.mxu0 %v1071
          %1125 = vmatpush1.bf16.msra.mxu0 %v1070
          %1126 = vmatprep.subr.bf16.mxu0 %v1067
          %1127 = vmatpush1.bf16.msra.mxu0 %v1066
          %1128 = vmatprep.subr.bf16.mxu0 %v1063
          %1129 = vmatpush1.bf16.msra.mxu0 %v1062
          %1130 = vmatprep.subr.bf16.mxu0 %v1059
          %1131 = vmatpush1.bf16.msra.mxu0 %v1058
          %1132 = vmatprep.subr.bf16.mxu0 %v1055
          %1133 = vmatpush1.bf16.msra.mxu0 %v1054
          %1134 = vmatprep.subr.bf16.mxu0 0
          %1135 = vmatpush2.bf16.msra.mxu0 0
          %1136 = vmatprep.subr.bf16.mxu0 0
          %1137 = vmatpush2.bf16.msra.mxu0 0
          %1138 = vmatprep.subr.bf16.mxu0 0
          %1139 = vmatpush2.bf16.msra.mxu0 0
          %1140 = vmatprep.subr.bf16.mxu0 0
          %1141 = vmatpush2.bf16.msra.mxu0 0
          %1142 = vmatprep.subr.bf16.mxu0 0
          %1143 = vmatpush2.bf16.msra.mxu0 0
          %1144 = vmatprep.subr.bf16.mxu0 0
          %1145 = vmatpush2.bf16.msra.mxu0 0
          %1146 = vmatprep.subr.bf16.mxu0 0
          %1147 = vmatpush2.bf16.msra.mxu0 0
          %1148 = vmatprep.subr.bf16.mxu0 0
          %1149 = vmatpush2.bf16.msra.mxu0 0
          %1150 = vmatprep.mubr.bf16.mxu0 0
          %1151 = vmatmul.mubr.bf16.gmra.mxu0 %v603
          %v1152 = vpop.f32.mrf.mxu0
          %v1153 = vadd.f32 %v941, %v1152
          %v1154 = vpop.f32.mrf.mxu0
          %v1155 = vadd.f32 %v945, %v1154
          %v1156 = vpop.f32.mrf.mxu0
          %v1157 = vpop.f32.mrf.mxu0
          %1158 = vdwg.mxu0
          %1159 = vmatprep.subr.bf16.mxu0 %v1085
          %1160 = vmatpush1.bf16.msra.mxu0 %v1084
          %1161 = vmatprep.subr.bf16.mxu0 %v1081
          %1162 = vmatpush1.bf16.msra.mxu0 %v1080
          %1163 = vmatprep.subr.bf16.mxu0 %v1077
          %1164 = vmatpush1.bf16.msra.mxu0 %v1076
          %1165 = vmatprep.subr.bf16.mxu0 %v1073
          %1166 = vmatpush1.bf16.msra.mxu0 %v1072
          %1167 = vmatprep.subr.bf16.mxu0 %v1069
          %1168 = vmatpush1.bf16.msra.mxu0 %v1068
          %1169 = vmatprep.subr.bf16.mxu0 %v1065
          %1170 = vmatpush1.bf16.msra.mxu0 %v1064
          %1171 = vmatprep.subr.bf16.mxu0 %v1061
          %1172 = vmatpush1.bf16.msra.mxu0 %v1060
          %1173 = vmatprep.subr.bf16.mxu0 %v1057
          %1174 = vmatpush1.bf16.msra.mxu0 %v1056
          %1175 = vmatprep.subr.bf16.mxu0 0
          %1176 = vmatpush2.bf16.msra.mxu0 0
          %1177 = vmatprep.subr.bf16.mxu0 0
          %1178 = vmatpush2.bf16.msra.mxu0 0
          %1179 = vmatprep.subr.bf16.mxu0 0
          %1180 = vmatpush2.bf16.msra.mxu0 0
          %1181 = vmatprep.subr.bf16.mxu0 0
          %1182 = vmatpush2.bf16.msra.mxu0 0
          %1183 = vmatprep.subr.bf16.mxu0 0
          %1184 = vmatpush2.bf16.msra.mxu0 0
          %1185 = vmatprep.subr.bf16.mxu0 0
          %1186 = vmatpush2.bf16.msra.mxu0 0
          %1187 = vmatprep.subr.bf16.mxu0 0
          %1188 = vmatpush2.bf16.msra.mxu0 0
          %1189 = vmatprep.subr.bf16.mxu0 0
          %1190 = vmatpush2.bf16.msra.mxu0 0
          %1191 = vmatprep.mubr.bf16.mxu0 0
          %1192 = vmatmul.mubr.bf16.gmra.mxu0 %v603
          %v1193 = vpop.f32.mrf.mxu0
          %v1194 = vadd.f32 %v949, %v1193
          %v1195 = vpop.f32.mrf.mxu0
          %v1196 = vadd.f32 %v953, %v1195
          %v1197 = vpop.f32.mrf.mxu0
          %v1198 = vpop.f32.mrf.mxu0
          %1199 = vdwg.mxu0
          %v1200 = vpack.c.bf16 %v1153, %v1153
          %v1201 = vpack.c.bf16 %v1155, %v1155
          %v1202 = vpack.c.bf16 %v1194, %v1194
          %v1203 = vpack.c.bf16 %v1196, %v1196
          %1204 = vst [vmem:[#allocation3] sm:$0xf] %v900
          %1205 = vst [vmem:[#allocation4] sm:$0xf] %v1200
          %s1206 = scalar_lea.vmem [#allocation3], 4
          %1207 = vst [vmem:[%s1206] sm:$0xf] %v901
          %s1208 = scalar_lea.vmem [#allocation4], 4
          %1209 = vst [vmem:[%s1208] sm:$0xf] %v1201
          %s1210 = scalar_lea.vmem [#allocation3], 8
          %1211 = vst [vmem:[%s1210] sm:$0xf] %v902
          %s1212 = scalar_lea.vmem [#allocation4], 8
          %1213 = vst [vmem:[%s1212] sm:$0xf] %v1202
          %s1214 = scalar_lea.vmem [#allocation3], 12
          %1215 = vst [vmem:[%s1214] sm:$0xf] %v903
          %s1216 = scalar_lea.vmem [#allocation4], 12
          %1217 = vst [vmem:[%s1216] sm:$0xf] %v1203
        $region96: #{tpu_custom_call.1} parent=63 // pred_fallthru
          _
        // Predicated region
        $region97: #{tpu_custom_call.1} parent=63 // pred_check
          %p1218 = pneg %p597
        $region98: #{tpu_custom_call.1} parent=63 // pred_check_branch
          %1220 = sbr.rel (%p1218) target = $region100
        $region99: #{tpu_custom_call.1} parent=63 // pred_region
          %v1221 = vld [vmem:[%s505] sm:$0xf]
          %v1222 = vld [vmem:[#allocation12] sm:$0xff]
          %v1223 = vld [vmem:[#allocation12 + $0x8] sm:$0xff]
          %v1224 = vld [vmem:[#allocation12 + $0x10] sm:$0xff]
          %v1225 = vld [vmem:[#allocation12 + $0x18] sm:$0xff]
          %v1226 = vld [vmem:[#allocation12 + $0x20] sm:$0xff]
          %v1227 = vld [vmem:[#allocation12 + $0x28] sm:$0xff]
          %v1228 = vld [vmem:[#allocation12 + $0x30] sm:$0xff]
          %v1229 = vld [vmem:[#allocation12 + $0x38] sm:$0xff]
          %v1230 = vld [vmem:[#allocation12 + $0x40] sm:$0xff]
          %v1231 = vld [vmem:[#allocation12 + $0x48] sm:$0xff]
          %v1232 = vld [vmem:[#allocation12 + $0x50] sm:$0xff]
          %v1233 = vld [vmem:[#allocation12 + $0x58] sm:$0xff]
          %v1234 = vld [vmem:[#allocation12 + $0x60] sm:$0xff]
          %v1235 = vld [vmem:[#allocation12 + $0x68] sm:$0xff]
          %v1236 = vld [vmem:[#allocation12 + $0x70] sm:$0xff]
          %v1237 = vld [vmem:[#allocation12 + $0x78] sm:$0xff]
          %v1238 = vld [vmem:[#allocation12 + $0x80] sm:$0xff]
          %v1239 = vld [vmem:[#allocation12 + $0x88] sm:$0xff]
          %v1240 = vld [vmem:[#allocation12 + $0x90] sm:$0xff]
          %v1241 = vld [vmem:[#allocation12 + $0x98] sm:$0xff]
          %v1242 = vld [vmem:[#allocation12 + $0xa0] sm:$0xff]
          %v1243 = vld [vmem:[#allocation12 + $0xa8] sm:$0xff]
          %v1244 = vld [vmem:[#allocation12 + $0xb0] sm:$0xff]
          %v1245 = vld [vmem:[#allocation12 + $0xb8] sm:$0xff]
          %v1246 = vld [vmem:[#allocation12 + $0xc0] sm:$0xff]
          %v1247 = vld [vmem:[#allocation12 + $0xc8] sm:$0xff]
          %v1248 = vld [vmem:[#allocation12 + $0xd0] sm:$0xff]
          %v1249 = vld [vmem:[#allocation12 + $0xd8] sm:$0xff]
          %v1250 = vld [vmem:[#allocation12 + $0xe0] sm:$0xff]
          %v1251 = vld [vmem:[#allocation12 + $0xe8] sm:$0xff]
          %v1252 = vld [vmem:[#allocation12 + $0xf0] sm:$0xff]
          %v1253 = vld [vmem:[#allocation12 + $0xf8] sm:$0xff]
          %v1254 = vld [vmem:[%s4] sm:$0xf]
          %v1256 = vlaneseq
          %v1257 = vshrl.u32 %v1256, 7
          %v1258 = vsub.s32 0, %v1257
          %v1259 = vrot.slane %v1254, %v1258
          %v1260 = vlaneseq
          %v1261 = vshrl.u32 %v1260, 7
          %v1262 = vsub.s32 1, %v1261
          %v1263 = vrot.slane %v1254, %v1262
          %v1264 = vlaneseq
          %v1265 = vshrl.u32 %v1264, 7
          %v1266 = vsub.s32 2, %v1265
          %v1267 = vrot.slane %v1254, %v1266
          %v1268 = vlaneseq
          %v1269 = vshrl.u32 %v1268, 7
          %v1270 = vsub.s32 3, %v1269
          %v1271 = vrot.slane %v1254, %v1270
          %v1308 = vunpack.c.l.b16 %v1222
          %v1309 = vunpack.c.h.b16 %v1222
          %v1310 = vunpack.c.l.b16 %v1223
          %v1311 = vunpack.c.h.b16 %v1223
          %v1312 = vunpack.c.l.b16 %v1224
          %v1313 = vunpack.c.h.b16 %v1224
          %v1314 = vunpack.c.l.b16 %v1225
          %v1315 = vunpack.c.h.b16 %v1225
          %v1316 = vunpack.c.l.b16 %v1226
          %v1317 = vunpack.c.h.b16 %v1226
          %v1318 = vunpack.c.l.b16 %v1227
          %v1319 = vunpack.c.h.b16 %v1227
          %v1320 = vunpack.c.l.b16 %v1228
          %v1321 = vunpack.c.h.b16 %v1228
          %v1322 = vunpack.c.l.b16 %v1229
          %v1323 = vunpack.c.h.b16 %v1229
          %v1324 = vunpack.c.l.b16 %v1230
          %v1325 = vunpack.c.h.b16 %v1230
          %v1326 = vunpack.c.l.b16 %v1231
          %v1327 = vunpack.c.h.b16 %v1231
          %v1328 = vunpack.c.l.b16 %v1232
          %v1329 = vunpack.c.h.b16 %v1232
          %v1330 = vunpack.c.l.b16 %v1233
          %v1331 = vunpack.c.h.b16 %v1233
          %v1332 = vunpack.c.l.b16 %v1234
          %v1333 = vunpack.c.h.b16 %v1234
          %v1334 = vunpack.c.l.b16 %v1235
          %v1335 = vunpack.c.h.b16 %v1235
          %v1336 = vunpack.c.l.b16 %v1236
          %v1337 = vunpack.c.h.b16 %v1236
          %v1338 = vunpack.c.l.b16 %v1237
          %v1339 = vunpack.c.h.b16 %v1237
          %v1340 = vunpack.c.l.b16 %v1238
          %v1341 = vunpack.c.h.b16 %v1238
          %v1342 = vunpack.c.l.b16 %v1239
          %v1343 = vunpack.c.h.b16 %v1239
          %v1344 = vunpack.c.l.b16 %v1240
          %v1345 = vunpack.c.h.b16 %v1240
          %v1346 = vunpack.c.l.b16 %v1241
          %v1347 = vunpack.c.h.b16 %v1241
          %v1348 = vunpack.c.l.b16 %v1242
          %v1349 = vunpack.c.h.b16 %v1242
          %v1350 = vunpack.c.l.b16 %v1243
          %v1351 = vunpack.c.h.b16 %v1243
          %v1352 = vunpack.c.l.b16 %v1244
          %v1353 = vunpack.c.h.b16 %v1244
          %v1354 = vunpack.c.l.b16 %v1245
          %v1355 = vunpack.c.h.b16 %v1245
          %v1356 = vunpack.c.l.b16 %v1246
          %v1357 = vunpack.c.h.b16 %v1246
          %v1358 = vunpack.c.l.b16 %v1247
          %v1359 = vunpack.c.h.b16 %v1247
          %v1360 = vunpack.c.l.b16 %v1248
          %v1361 = vunpack.c.h.b16 %v1248
          %v1362 = vunpack.c.l.b16 %v1249
          %v1363 = vunpack.c.h.b16 %v1249
          %v1364 = vunpack.c.l.b16 %v1250
          %v1365 = vunpack.c.h.b16 %v1250
          %v1366 = vunpack.c.l.b16 %v1251
          %v1367 = vunpack.c.h.b16 %v1251
          %v1368 = vunpack.c.l.b16 %v1252
          %v1369 = vunpack.c.h.b16 %v1252
          %v1370 = vunpack.c.l.b16 %v1253
          %v1371 = vunpack.c.h.b16 %v1253
          %v1372 = vpack.c.b16 %v1312, %v1308
          %v1373 = vpack.c.b16 %v1313, %v1309
          %v1374 = vpack.c.b16 %v1314, %v1310
          %v1375 = vpack.c.b16 %v1315, %v1311
          %v1376 = vpack.c.b16 %v1320, %v1316
          %v1377 = vpack.c.b16 %v1321, %v1317
          %v1378 = vpack.c.b16 %v1322, %v1318
          %v1379 = vpack.c.b16 %v1323, %v1319
          %v1380 = vpack.c.b16 %v1328, %v1324
          %v1381 = vpack.c.b16 %v1329, %v1325
          %v1382 = vpack.c.b16 %v1330, %v1326
          %v1383 = vpack.c.b16 %v1331, %v1327
          %v1384 = vpack.c.b16 %v1336, %v1332
          %v1385 = vpack.c.b16 %v1337, %v1333
          %v1386 = vpack.c.b16 %v1338, %v1334
          %v1387 = vpack.c.b16 %v1339, %v1335
          %v1388 = vpack.c.b16 %v1344, %v1340
          %v1389 = vpack.c.b16 %v1345, %v1341
          %v1390 = vpack.c.b16 %v1346, %v1342
          %v1391 = vpack.c.b16 %v1347, %v1343
          %v1392 = vpack.c.b16 %v1352, %v1348
          %v1393 = vpack.c.b16 %v1353, %v1349
          %v1394 = vpack.c.b16 %v1354, %v1350
          %v1395 = vpack.c.b16 %v1355, %v1351
          %v1396 = vpack.c.b16 %v1360, %v1356
          %v1397 = vpack.c.b16 %v1361, %v1357
          %v1398 = vpack.c.b16 %v1362, %v1358
          %v1399 = vpack.c.b16 %v1363, %v1359
          %v1400 = vpack.c.b16 %v1368, %v1364
          %v1401 = vpack.c.b16 %v1369, %v1365
          %v1402 = vpack.c.b16 %v1370, %v1366
          %v1403 = vpack.c.b16 %v1371, %v1367
          %1436 = vmatprep.subr.bf16.mxu0 %v1401
          %1437 = vmatpush1.bf16.msra.mxu0 %v1400
          %1438 = vmatprep.subr.bf16.mxu0 %v1397
          %1439 = vmatpush1.bf16.msra.mxu0 %v1396
          %1440 = vmatprep.subr.bf16.mxu0 %v1393
          %1441 = vmatpush1.bf16.msra.mxu0 %v1392
          %1442 = vmatprep.subr.bf16.mxu0 %v1389
          %1443 = vmatpush1.bf16.msra.mxu0 %v1388
          %1444 = vmatprep.subr.bf16.mxu0 %v1385
          %1445 = vmatpush1.bf16.msra.mxu0 %v1384
          %1446 = vmatprep.subr.bf16.mxu0 %v1381
          %1447 = vmatpush1.bf16.msra.mxu0 %v1380
          %1448 = vmatprep.subr.bf16.mxu0 %v1377
          %1449 = vmatpush1.bf16.msra.mxu0 %v1376
          %1450 = vmatprep.subr.bf16.mxu0 %v1373
          %1451 = vmatpush1.bf16.msra.mxu0 %v1372
          %1452 = vmatprep.subr.bf16.mxu0 0
          %1453 = vmatpush2.bf16.msra.mxu0 0
          %1454 = vmatprep.subr.bf16.mxu0 0
          %1455 = vmatpush2.bf16.msra.mxu0 0
          %1456 = vmatprep.subr.bf16.mxu0 0
          %1457 = vmatpush2.bf16.msra.mxu0 0
          %1458 = vmatprep.subr.bf16.mxu0 0
          %1459 = vmatpush2.bf16.msra.mxu0 0
          %1460 = vmatprep.subr.bf16.mxu0 0
          %1461 = vmatpush2.bf16.msra.mxu0 0
          %1462 = vmatprep.subr.bf16.mxu0 0
          %1463 = vmatpush2.bf16.msra.mxu0 0
          %1464 = vmatprep.subr.bf16.mxu0 0
          %1465 = vmatpush2.bf16.msra.mxu0 0
          %1466 = vmatprep.subr.bf16.mxu0 0
          %1467 = vmatpush2.bf16.msra.mxu0 0
          %1468 = vmatprep.mubr.bf16.mxu0 0
          %1469 = vmatmul.mubr.bf16.gmra.mxu0 %v1221
          %v1470 = vpop.f32.mrf.mxu0
          %v1471 = vadd.f32 %v1259, %v1470
          %v1472 = vpop.f32.mrf.mxu0
          %v1473 = vadd.f32 %v1263, %v1472
          %v1474 = vpop.f32.mrf.mxu0
          %v1475 = vpop.f32.mrf.mxu0
          %1476 = vdwg.mxu0
          %1477 = vmatprep.subr.bf16.mxu0 %v1403
          %1478 = vmatpush1.bf16.msra.mxu0 %v1402
          %1479 = vmatprep.subr.bf16.mxu0 %v1399
          %1480 = vmatpush1.bf16.msra.mxu0 %v1398
          %1481 = vmatprep.subr.bf16.mxu0 %v1395
          %1482 = vmatpush1.bf16.msra.mxu0 %v1394
          %1483 = vmatprep.subr.bf16.mxu0 %v1391
          %1484 = vmatpush1.bf16.msra.mxu0 %v1390
          %1485 = vmatprep.subr.bf16.mxu0 %v1387
          %1486 = vmatpush1.bf16.msra.mxu0 %v1386
          %1487 = vmatprep.subr.bf16.mxu0 %v1383
          %1488 = vmatpush1.bf16.msra.mxu0 %v1382
          %1489 = vmatprep.subr.bf16.mxu0 %v1379
          %1490 = vmatpush1.bf16.msra.mxu0 %v1378
          %1491 = vmatprep.subr.bf16.mxu0 %v1375
          %1492 = vmatpush1.bf16.msra.mxu0 %v1374
          %1493 = vmatprep.subr.bf16.mxu0 0
          %1494 = vmatpush2.bf16.msra.mxu0 0
          %1495 = vmatprep.subr.bf16.mxu0 0
          %1496 = vmatpush2.bf16.msra.mxu0 0
          %1497 = vmatprep.subr.bf16.mxu0 0
          %1498 = vmatpush2.bf16.msra.mxu0 0
          %1499 = vmatprep.subr.bf16.mxu0 0
          %1500 = vmatpush2.bf16.msra.mxu0 0
          %1501 = vmatprep.subr.bf16.mxu0 0
          %1502 = vmatpush2.bf16.msra.mxu0 0
          %1503 = vmatprep.subr.bf16.mxu0 0
          %1504 = vmatpush2.bf16.msra.mxu0 0
          %1505 = vmatprep.subr.bf16.mxu0 0
          %1506 = vmatpush2.bf16.msra.mxu0 0
          %1507 = vmatprep.subr.bf16.mxu0 0
          %1508 = vmatpush2.bf16.msra.mxu0 0
          %1509 = vmatprep.mubr.bf16.mxu0 0
          %1510 = vmatmul.mubr.bf16.gmra.mxu0 %v1221
          %v1511 = vpop.f32.mrf.mxu0
          %v1512 = vadd.f32 %v1267, %v1511
          %v1513 = vpop.f32.mrf.mxu0
          %v1514 = vadd.f32 %v1271, %v1513
          %v1515 = vpop.f32.mrf.mxu0
          %v1516 = vpop.f32.mrf.mxu0
          %1517 = vdwg.mxu0
          %v1518 = vpack.c.bf16 %v1471, %v1471
          %v1519 = vpack.c.bf16 %v1473, %v1473
          %v1520 = vpack.c.bf16 %v1512, %v1512
          %v1521 = vpack.c.bf16 %v1514, %v1514
          %1522 = vst [vmem:[#allocation2] sm:$0xf] %v1518
          %s1523 = scalar_lea.vmem [#allocation2], 4
          %1524 = vst [vmem:[%s1523] sm:$0xf] %v1519
          %s1525 = scalar_lea.vmem [#allocation2], 8
          %1526 = vst [vmem:[%s1525] sm:$0xf] %v1520
          %s1527 = scalar_lea.vmem [#allocation2], 12
          %1528 = vst [vmem:[%s1527] sm:$0xf] %v1521
        $region100: #{tpu_custom_call.1} parent=63 // pred_fallthru
          _
        %s1529 = smul.addr %s45, 4
        %s1530 = scalar_lea.vmem [#allocation2], %s1529
        %v1531 = vld [vmem:[%s1530] sm:$0xf]
        %s1532 = smul.addr %s45, 4
        %s1533 = scalar_lea.vmem [#allocation3], %s1532
        %v1534 = vld [vmem:[%s1533] sm:$0xf]
        %s1535 = smul.addr %s45, 4
        %s1536 = scalar_lea.vmem [#allocation4], %s1535
        %v1537 = vld [vmem:[%s1536] sm:$0xf]
        %1538 = vmatprep.subr.bf16.mxu0 0
        %1539 = vmatpush1.bf16.xpose.msra.mxu0 0
        %1540 = vmatprep.subr.bf16.mxu0 0
        %1541 = vmatpush1.bf16.xpose.msra.mxu0 0
        %1542 = vmatprep.subr.bf16.mxu0 0
        %1543 = vmatpush1.bf16.xpose.msra.mxu0 0
        %1544 = vmatprep.subr.bf16.mxu0 0
        %1545 = vmatpush1.bf16.xpose.msra.mxu0 0
        %1546 = vmatprep.subr.bf16.mxu0 0
        %1547 = vmatpush1.bf16.xpose.msra.mxu0 0
        %1548 = vmatprep.subr.bf16.mxu0 0
        %1549 = vmatpush1.bf16.xpose.msra.mxu0 0
        %1550 = vmatprep.subr.bf16.mxu0 0
        %1551 = vmatpush1.bf16.xpose.msra.mxu0 0
        %1552 = vmatprep.subr.bf16.mxu0 0
        %1553 = vmatpush1.bf16.xpose.msra.mxu0 %v1534
        %1554 = vmatprep.subr.bf16.mxu0 0
        %1555 = vmatpush2.bf16.xpose.msra.mxu0 0
        %1556 = vmatprep.subr.bf16.mxu0 0
        %1557 = vmatpush2.bf16.xpose.msra.mxu0 0
        %1558 = vmatprep.subr.bf16.mxu0 0
        %1559 = vmatpush2.bf16.xpose.msra.mxu0 0
        %1560 = vmatprep.subr.bf16.mxu0 0
        %1561 = vmatpush2.bf16.xpose.msra.mxu0 0
        %1562 = vmatprep.subr.bf16.mxu0 0
        %1563 = vmatpush2.bf16.xpose.msra.mxu0 0
        %1564 = vmatprep.subr.bf16.mxu0 0
        %1565 = vmatpush2.bf16.xpose.msra.mxu0 0
        %1566 = vmatprep.subr.bf16.mxu0 0
        %1567 = vmatpush2.bf16.xpose.msra.mxu0 0
        %1568 = vmatprep.subr.bf16.mxu0 0
        %1569 = vmatpush2.bf16.xpose.msra.mxu0 0
        %1570 = vmatprep.mubr.bf16.mxu0 0
        %1571 = vmatmul.mubr.bf16.gmra.mxu0 %v1531
        %v1572 = vpop.f32.mrf.mxu0
        %v1573 = vadd.f32 0.0, %v1572
        %v1574 = vpop.f32.mrf.mxu0
        %v1575 = vpop.f32.mrf.mxu0
        %v1576 = vpop.f32.mrf.mxu0
        %1577 = vdwg.mxu0
        %vm1578 = vcmask 64512
        %v1579 = vsel %vm1578, %v1573, -inf
        %1580 = vmax.xlane.f32.xlu0 %v1579
        %v1581 = vpop.xlane.xlu0 %1580
        %v1582 = vsub.f32 %v1573, %v1581
        %v1583 = vmul.f32 %v1582, 1.442695
        %v1584 = vpow.pop %v1583
        %v1585 = vsel %vm1578, %v1584, 0.0
        %1586 = vadd.xlane.f32.xlu0 %v1585
        %v1587 = vpop.xlane.xlu0 %1586
        %v1588 = vrcp.pop %v1587
        %v1589 = vmul.f32 %v1584, %v1588
        %v1590 = vpack.c.bf16 %v1589, %v1589
        %v1592 = vsel %vm1578, %v1590, 0
        %vm1594 = vcmask 1043456
        %v1596 = vsel %vm1594, %v1537, 0
        %1598 = vmatprep.subr.bf16.mxu0 0
        %1599 = vmatpush1.bf16.msra.mxu0 0
        %1600 = vmatprep.subr.bf16.mxu0 0
        %1601 = vmatpush1.bf16.msra.mxu0 0
        %1602 = vmatprep.subr.bf16.mxu0 0
        %1603 = vmatpush1.bf16.msra.mxu0 0
        %1604 = vmatprep.subr.bf16.mxu0 0
        %1605 = vmatpush1.bf16.msra.mxu0 0
        %1606 = vmatprep.subr.bf16.mxu0 0
        %1607 = vmatpush1.bf16.msra.mxu0 0
        %1608 = vmatprep.subr.bf16.mxu0 0
        %1609 = vmatpush1.bf16.msra.mxu0 0
        %1610 = vmatprep.subr.bf16.mxu0 0
        %1611 = vmatpush1.bf16.msra.mxu0 0
        %1612 = vmatprep.subr.bf16.mxu0 0
        %1613 = vmatpush1.bf16.msra.mxu0 %v1596
        %1614 = vmatprep.subr.bf16.mxu0 0
        %1615 = vmatpush2.bf16.msra.mxu0 0
        %1616 = vmatprep.subr.bf16.mxu0 0
        %1617 = vmatpush2.bf16.msra.mxu0 0
        %1618 = vmatprep.subr.bf16.mxu0 0
        %1619 = vmatpush2.bf16.msra.mxu0 0
        %1620 = vmatprep.subr.bf16.mxu0 0
        %1621 = vmatpush2.bf16.msra.mxu0 0
        %1622 = vmatprep.subr.bf16.mxu0 0
        %1623 = vmatpush2.bf16.msra.mxu0 0
        %1624 = vmatprep.subr.bf16.mxu0 0
        %1625 = vmatpush2.bf16.msra.mxu0 0
        %1626 = vmatprep.subr.bf16.mxu0 0
        %1627 = vmatpush2.bf16.msra.mxu0 0
        %1628 = vmatprep.subr.bf16.mxu0 0
        %1629 = vmatpush2.bf16.msra.mxu0 0
        %1630 = vmatprep.mubr.bf16.mxu0 0
        %1631 = vmatmul.mubr.bf16.gmra.mxu0 %v1592
        %v1632 = vpop.f32.mrf.mxu0
        %v1633 = vadd.f32 0.0, %v1632
        %v1634 = vpop.f32.mrf.mxu0
        %v1635 = vpop.f32.mrf.mxu0
        %v1636 = vpop.f32.mrf.mxu0
        %1637 = vdwg.mxu0
        %s1638 = smul.u32 %s45, 8
        %s1639 = scalar_lea.vmem [#allocation5], %s1638
        %1640 = vst [vmem:[%s1639] sm:$0xff] %v1633
        %p1641 = scmp.eq.s32.totalorder %s45, 3
        // Predicated region
        $region101: #{tpu_custom_call.1} parent=63 // pred_check
          %p1642 = pneg %p1641
        $region102: #{tpu_custom_call.1} parent=63 // pred_check_branch
          %1644 = sbr.rel (%p1642) target = $region104
        $region103: #{tpu_custom_call.1} parent=63 // pred_region
          %v1645 = vld [vmem:[#allocation5] sm:$0xff]
          %s1646 = scalar_lea.vmem [#allocation5], 8
          %v1647 = vld [vmem:[%s1646] sm:$0xff]
          %s1648 = scalar_lea.vmem [#allocation5], 16
          %v1649 = vld [vmem:[%s1648] sm:$0xff]
          %s1650 = scalar_lea.vmem [#allocation5], 24
          %v1651 = vld [vmem:[%s1650] sm:$0xff]
          %1652 = vst [vmem:[%s594] sm:$0xff] %v1645
          %1653 = vst [vmem:[%s594 + $0x8] sm:$0xff] %v1647
          %1654 = vst [vmem:[%s594 + $0x10] sm:$0xff] %v1649
          %1655 = vst [vmem:[%s594 + $0x18] sm:$0xff] %v1651
          %v1656 = vpack.c.bf16 %v1645, %v1645
          %v1657 = vpack.c.bf16 %v1647, %v1647
          %v1658 = vpack.c.bf16 %v1649, %v1649
          %v1659 = vpack.c.bf16 %v1651, %v1651
          %v1660 = vld [vmem:[#allocation17] sm:$0xf]
          %v1661 = vld [vmem:[#allocation17 + $0x4] sm:$0xf]
          %v1662 = vld [vmem:[#allocation17 + $0x8] sm:$0xf]
          %v1663 = vld [vmem:[#allocation17 + $0xc] sm:$0xf]
          %v1664 = vld [vmem:[#allocation17 + $0x10] sm:$0xf]
          %v1665 = vld [vmem:[#allocation17 + $0x14] sm:$0xf]
          %v1666 = vld [vmem:[#allocation17 + $0x18] sm:$0xf]
          %v1667 = vld [vmem:[#allocation17 + $0x1c] sm:$0xf]
          %v1668 = vld [vmem:[#allocation17 + $0x20] sm:$0xf]
          %v1669 = vld [vmem:[#allocation17 + $0x24] sm:$0xf]
          %v1670 = vld [vmem:[#allocation17 + $0x28] sm:$0xf]
          %v1671 = vld [vmem:[#allocation17 + $0x2c] sm:$0xf]
          %v1672 = vld [vmem:[#allocation17 + $0x30] sm:$0xf]
          %v1673 = vld [vmem:[#allocation17 + $0x34] sm:$0xf]
          %v1674 = vld [vmem:[#allocation17 + $0x38] sm:$0xf]
          %v1675 = vld [vmem:[#allocation17 + $0x3c] sm:$0xf]
          %v1676 = vld [vmem:[#allocation17 + $0x40] sm:$0xf]
          %v1677 = vld [vmem:[#allocation17 + $0x44] sm:$0xf]
          %v1678 = vld [vmem:[#allocation17 + $0x48] sm:$0xf]
          %v1679 = vld [vmem:[#allocation17 + $0x4c] sm:$0xf]
          %v1680 = vld [vmem:[#allocation17 + $0x50] sm:$0xf]
          %v1681 = vld [vmem:[#allocation17 + $0x54] sm:$0xf]
          %v1682 = vld [vmem:[#allocation17 + $0x58] sm:$0xf]
          %v1683 = vld [vmem:[#allocation17 + $0x5c] sm:$0xf]
          %v1684 = vld [vmem:[#allocation17 + $0x60] sm:$0xf]
          %v1685 = vld [vmem:[#allocation17 + $0x64] sm:$0xf]
          %v1686 = vld [vmem:[#allocation17 + $0x68] sm:$0xf]
          %v1687 = vld [vmem:[#allocation17 + $0x6c] sm:$0xf]
          %v1688 = vld [vmem:[#allocation17 + $0x70] sm:$0xf]
          %v1689 = vld [vmem:[#allocation17 + $0x74] sm:$0xf]
          %v1690 = vld [vmem:[#allocation17 + $0x78] sm:$0xf]
          %v1691 = vld [vmem:[#allocation17 + $0x7c] sm:$0xf]
          %v1692 = vld [vmem:[#allocation17 + $0x80] sm:$0xf]
          %v1693 = vld [vmem:[#allocation17 + $0x84] sm:$0xf]
          %v1694 = vld [vmem:[#allocation17 + $0x88] sm:$0xf]
          %v1695 = vld [vmem:[#allocation17 + $0x8c] sm:$0xf]
          %v1696 = vld [vmem:[#allocation17 + $0x90] sm:$0xf]
          %v1697 = vld [vmem:[#allocation17 + $0x94] sm:$0xf]
          %v1698 = vld [vmem:[#allocation17 + $0x98] sm:$0xf]
          %v1699 = vld [vmem:[#allocation17 + $0x9c] sm:$0xf]
          %v1700 = vld [vmem:[#allocation17 + $0xa0] sm:$0xf]
          %v1701 = vld [vmem:[#allocation17 + $0xa4] sm:$0xf]
          %v1702 = vld [vmem:[#allocation17 + $0xa8] sm:$0xf]
          %v1703 = vld [vmem:[#allocation17 + $0xac] sm:$0xf]
          %v1704 = vld [vmem:[#allocation17 + $0xb0] sm:$0xf]
          %v1705 = vld [vmem:[#allocation17 + $0xb4] sm:$0xf]
          %v1706 = vld [vmem:[#allocation17 + $0xb8] sm:$0xf]
          %v1707 = vld [vmem:[#allocation17 + $0xbc] sm:$0xf]
          %v1708 = vld [vmem:[#allocation17 + $0xc0] sm:$0xf]
          %v1709 = vld [vmem:[#allocation17 + $0xc4] sm:$0xf]
          %v1710 = vld [vmem:[#allocation17 + $0xc8] sm:$0xf]
          %v1711 = vld [vmem:[#allocation17 + $0xcc] sm:$0xf]
          %v1712 = vld [vmem:[#allocation17 + $0xd0] sm:$0xf]
          %v1713 = vld [vmem:[#allocation17 + $0xd4] sm:$0xf]
          %v1714 = vld [vmem:[#allocation17 + $0xd8] sm:$0xf]
          %v1715 = vld [vmem:[#allocation17 + $0xdc] sm:$0xf]
          %v1716 = vld [vmem:[#allocation17 + $0xe0] sm:$0xf]
          %v1717 = vld [vmem:[#allocation17 + $0xe4] sm:$0xf]
          %v1718 = vld [vmem:[#allocation17 + $0xe8] sm:$0xf]
          %v1719 = vld [vmem:[#allocation17 + $0xec] sm:$0xf]
          %v1720 = vld [vmem:[#allocation17 + $0xf0] sm:$0xf]
          %v1721 = vld [vmem:[#allocation17 + $0xf4] sm:$0xf]
          %v1722 = vld [vmem:[#allocation17 + $0xf8] sm:$0xf]
          %v1723 = vld [vmem:[#allocation17 + $0xfc] sm:$0xf]
          %v1724 = vld [vmem:[%s10] sm:$0x1]
          %v1726 = vlaneseq
          %v1727 = vshrl.u32 %v1726, 7
          %v1728 = vsub.s32 0, %v1727
          %v1729 = vrot.slane %v1724, %v1728
          %v1795 = vunpack.c.l.b16 %v1660
          %v1796 = vunpack.c.l.b16 %v1661
          %v1797 = vunpack.c.l.b16 %v1662
          %v1798 = vunpack.c.l.b16 %v1663
          %v1799 = vunpack.c.l.b16 %v1664
          %v1800 = vunpack.c.l.b16 %v1665
          %v1801 = vunpack.c.l.b16 %v1666
          %v1802 = vunpack.c.l.b16 %v1667
          %v1803 = vunpack.c.l.b16 %v1668
          %v1804 = vunpack.c.l.b16 %v1669
          %v1805 = vunpack.c.l.b16 %v1670
          %v1806 = vunpack.c.l.b16 %v1671
          %v1807 = vunpack.c.l.b16 %v1672
          %v1808 = vunpack.c.l.b16 %v1673
          %v1809 = vunpack.c.l.b16 %v1674
          %v1810 = vunpack.c.l.b16 %v1675
          %v1811 = vunpack.c.l.b16 %v1676
          %v1812 = vunpack.c.l.b16 %v1677
          %v1813 = vunpack.c.l.b16 %v1678
          %v1814 = vunpack.c.l.b16 %v1679
          %v1815 = vunpack.c.l.b16 %v1680
          %v1816 = vunpack.c.l.b16 %v1681
          %v1817 = vunpack.c.l.b16 %v1682
          %v1818 = vunpack.c.l.b16 %v1683
          %v1819 = vunpack.c.l.b16 %v1684
          %v1820 = vunpack.c.l.b16 %v1685
          %v1821 = vunpack.c.l.b16 %v1686
          %v1822 = vunpack.c.l.b16 %v1687
          %v1823 = vunpack.c.l.b16 %v1688
          %v1824 = vunpack.c.l.b16 %v1689
          %v1825 = vunpack.c.l.b16 %v1690
          %v1826 = vunpack.c.l.b16 %v1691
          %v1827 = vunpack.c.l.b16 %v1692
          %v1828 = vunpack.c.l.b16 %v1693
          %v1829 = vunpack.c.l.b16 %v1694
          %v1830 = vunpack.c.l.b16 %v1695
          %v1831 = vunpack.c.l.b16 %v1696
          %v1832 = vunpack.c.l.b16 %v1697
          %v1833 = vunpack.c.l.b16 %v1698
          %v1834 = vunpack.c.l.b16 %v1699
          %v1835 = vunpack.c.l.b16 %v1700
          %v1836 = vunpack.c.l.b16 %v1701
          %v1837 = vunpack.c.l.b16 %v1702
          %v1838 = vunpack.c.l.b16 %v1703
          %v1839 = vunpack.c.l.b16 %v1704
          %v1840 = vunpack.c.l.b16 %v1705
          %v1841 = vunpack.c.l.b16 %v1706
          %v1842 = vunpack.c.l.b16 %v1707
          %v1843 = vunpack.c.l.b16 %v1708
          %v1844 = vunpack.c.l.b16 %v1709
          %v1845 = vunpack.c.l.b16 %v1710
          %v1846 = vunpack.c.l.b16 %v1711
          %v1847 = vunpack.c.l.b16 %v1712
          %v1848 = vunpack.c.l.b16 %v1713
          %v1849 = vunpack.c.l.b16 %v1714
          %v1850 = vunpack.c.l.b16 %v1715
          %v1851 = vunpack.c.l.b16 %v1716
          %v1852 = vunpack.c.l.b16 %v1717
          %v1853 = vunpack.c.l.b16 %v1718
          %v1854 = vunpack.c.l.b16 %v1719
          %v1855 = vunpack.c.l.b16 %v1720
          %v1856 = vunpack.c.l.b16 %v1721
          %v1857 = vunpack.c.l.b16 %v1722
          %v1858 = vunpack.c.l.b16 %v1723
          %v1859 = vpack.c.b16 %v1796, %v1795
          %v1860 = vpack.c.b16 %v1798, %v1797
          %v1861 = vpack.c.b16 %v1800, %v1799
          %v1862 = vpack.c.b16 %v1802, %v1801
          %v1863 = vpack.c.b16 %v1804, %v1803
          %v1864 = vpack.c.b16 %v1806, %v1805
          %v1865 = vpack.c.b16 %v1808, %v1807
          %v1866 = vpack.c.b16 %v1810, %v1809
          %v1867 = vpack.c.b16 %v1812, %v1811
          %v1868 = vpack.c.b16 %v1814, %v1813
          %v1869 = vpack.c.b16 %v1816, %v1815
          %v1870 = vpack.c.b16 %v1818, %v1817
          %v1871 = vpack.c.b16 %v1820, %v1819
          %v1872 = vpack.c.b16 %v1822, %v1821
          %v1873 = vpack.c.b16 %v1824, %v1823
          %v1874 = vpack.c.b16 %v1826, %v1825
          %v1875 = vpack.c.b16 %v1828, %v1827
          %v1876 = vpack.c.b16 %v1830, %v1829
          %v1877 = vpack.c.b16 %v1832, %v1831
          %v1878 = vpack.c.b16 %v1834, %v1833
          %v1879 = vpack.c.b16 %v1836, %v1835
          %v1880 = vpack.c.b16 %v1838, %v1837
          %v1881 = vpack.c.b16 %v1840, %v1839
          %v1882 = vpack.c.b16 %v1842, %v1841
          %v1883 = vpack.c.b16 %v1844, %v1843
          %v1884 = vpack.c.b16 %v1846, %v1845
          %v1885 = vpack.c.b16 %v1848, %v1847
          %v1886 = vpack.c.b16 %v1850, %v1849
          %v1887 = vpack.c.b16 %v1852, %v1851
          %v1888 = vpack.c.b16 %v1854, %v1853
          %v1889 = vpack.c.b16 %v1856, %v1855
          %v1890 = vpack.c.b16 %v1858, %v1857
          %1923 = vmatprep.subr.bf16.mxu0 0
          %1924 = vmatpush1.bf16.msra.mxu0 %v1866
          %1925 = vmatprep.subr.bf16.mxu0 0
          %1926 = vmatpush1.bf16.msra.mxu0 %v1865
          %1927 = vmatprep.subr.bf16.mxu0 0
          %1928 = vmatpush1.bf16.msra.mxu0 %v1864
          %1929 = vmatprep.subr.bf16.mxu0 0
          %1930 = vmatpush1.bf16.msra.mxu0 %v1863
          %1931 = vmatprep.subr.bf16.mxu0 0
          %1932 = vmatpush1.bf16.msra.mxu0 %v1862
          %1933 = vmatprep.subr.bf16.mxu0 0
          %1934 = vmatpush1.bf16.msra.mxu0 %v1861
          %1935 = vmatprep.subr.bf16.mxu0 0
          %1936 = vmatpush1.bf16.msra.mxu0 %v1860
          %1937 = vmatprep.subr.bf16.mxu0 0
          %1938 = vmatpush1.bf16.msra.mxu0 %v1859
          %1939 = vmatprep.subr.bf16.mxu0 0
          %1940 = vmatpush2.bf16.msra.mxu0 %v1874
          %1941 = vmatprep.subr.bf16.mxu0 0
          %1942 = vmatpush2.bf16.msra.mxu0 %v1873
          %1943 = vmatprep.subr.bf16.mxu0 0
          %1944 = vmatpush2.bf16.msra.mxu0 %v1872
          %1945 = vmatprep.subr.bf16.mxu0 0
          %1946 = vmatpush2.bf16.msra.mxu0 %v1871
          %1947 = vmatprep.subr.bf16.mxu0 0
          %1948 = vmatpush2.bf16.msra.mxu0 %v1870
          %1949 = vmatprep.subr.bf16.mxu0 0
          %1950 = vmatpush2.bf16.msra.mxu0 %v1869
          %1951 = vmatprep.subr.bf16.mxu0 0
          %1952 = vmatpush2.bf16.msra.mxu0 %v1868
          %1953 = vmatprep.subr.bf16.mxu0 0
          %1954 = vmatpush2.bf16.msra.mxu0 %v1867
          %1955 = vmatprep.mubr.bf16.mxu0 %v1657
          %1956 = vmatmul.mubr.bf16.gmra.mxu0 %v1656
          %v1957 = vpop.f32.mrf.mxu0
          %v1958 = vadd.f32 %v1729, %v1957
          %v1959 = vpop.f32.mrf.mxu0
          %v1960 = vpop.f32.mrf.mxu0
          %v1961 = vpop.f32.mrf.mxu0
          %1962 = vdwg.mxu0
          %1963 = vmatprep.subr.bf16.mxu0 0
          %1964 = vmatpush1.bf16.msra.mxu0 %v1882
          %1965 = vmatprep.subr.bf16.mxu0 0
          %1966 = vmatpush1.bf16.msra.mxu0 %v1881
          %1967 = vmatprep.subr.bf16.mxu0 0
          %1968 = vmatpush1.bf16.msra.mxu0 %v1880
          %1969 = vmatprep.subr.bf16.mxu0 0
          %1970 = vmatpush1.bf16.msra.mxu0 %v1879
          %1971 = vmatprep.subr.bf16.mxu0 0
          %1972 = vmatpush1.bf16.msra.mxu0 %v1878
          %1973 = vmatprep.subr.bf16.mxu0 0
          %1974 = vmatpush1.bf16.msra.mxu0 %v1877
          %1975 = vmatprep.subr.bf16.mxu0 0
          %1976 = vmatpush1.bf16.msra.mxu0 %v1876
          %1977 = vmatprep.subr.bf16.mxu0 0
          %1978 = vmatpush1.bf16.msra.mxu0 %v1875
          %1979 = vmatprep.subr.bf16.mxu0 0
          %1980 = vmatpush2.bf16.msra.mxu0 %v1890
          %1981 = vmatprep.subr.bf16.mxu0 0
          %1982 = vmatpush2.bf16.msra.mxu0 %v1889
          %1983 = vmatprep.subr.bf16.mxu0 0
          %1984 = vmatpush2.bf16.msra.mxu0 %v1888
          %1985 = vmatprep.subr.bf16.mxu0 0
          %1986 = vmatpush2.bf16.msra.mxu0 %v1887
          %1987 = vmatprep.subr.bf16.mxu0 0
          %1988 = vmatpush2.bf16.msra.mxu0 %v1886
          %1989 = vmatprep.subr.bf16.mxu0 0
          %1990 = vmatpush2.bf16.msra.mxu0 %v1885
          %1991 = vmatprep.subr.bf16.mxu0 0
          %1992 = vmatpush2.bf16.msra.mxu0 %v1884
          %1993 = vmatprep.subr.bf16.mxu0 0
          %1994 = vmatpush2.bf16.msra.mxu0 %v1883
          %1995 = vmatprep.mubr.bf16.mxu0 %v1659
          %1996 = vmatmul.mubr.bf16.gmra.mxu0 %v1658
          %v1997 = vpop.f32.mrf.mxu0
          %v1998 = vadd.f32 %v1958, %v1997
          %v1999 = vpop.f32.mrf.mxu0
          %v2000 = vpop.f32.mrf.mxu0
          %v2001 = vpop.f32.mrf.mxu0
          %2002 = vdwg.mxu0
          %2003 = vst [vmem:[%s587] sm:$0xff] %v1998
        $region104: #{tpu_custom_call.1} parent=63 // pred_fallthru
          _
        %s2004 = sand.u32 %s315, 1
        %s2005 = scalar_lea.sflag [#allocation8], %s2004
        %s2006 = sand.u32 %s315, 1
        %s2007 = smul.addr %s2006, 8
        %s2008 = scalar_lea.vmem [#allocation18], %s2007
        %s2009 = sand.u32 %s343, 1
        %s2010 = scalar_lea.sflag [#allocation20], %s2009
        %s2011 = sand.u32 %s343, 1
        %s2012 = smul.addr %s2011, 32
        %s2013 = scalar_lea.vmem [#allocation19], %s2012
        // Predicated region
        $region105: #{tpu_custom_call.1} parent=63 // pred_check
          %p2014 = pneg %p325
        $region106: #{tpu_custom_call.1} parent=63 // pred_check_branch
          %2016 = sbr.rel (%p2014) target = $region108
        $region107: #{tpu_custom_call.1} parent=63 // pred_region
          %s2018 = ssub.s32 128, 128
          %2019 = vsyncadd %s2005, %s2018
          %s2020 = sadd.s32 %s44, %s43
          %s2021 = smul.addr %s2020, 128
          %s2022 = scalar_lea.hbm %s11, %s2021
          %s2024 = sshll.u32 %s2008, 4
          %s2025 = int_to_ptr.vmem [resolvable:$true] %s2024
          %2027 = dma.vmem_to_hbm [thread:$0]  %s2025, 128, %s2022, %s2005
        $region108: #{tpu_custom_call.1} parent=63 // pred_fallthru
          _
        // Predicated region
        $region109: #{tpu_custom_call.1} parent=63 // pred_check
          %p2028 = pneg %p353
        $region110: #{tpu_custom_call.1} parent=63 // pred_check_branch
          %2030 = sbr.rel (%p2028) target = $region112
        $region111: #{tpu_custom_call.1} parent=63 // pred_region
          %s2032 = ssub.s32 512, 512
          %2033 = vsyncadd %s2010, %s2032
          %s2034 = smul.addr %s44, 4
          %s2035 = smul.addr %s43, 4
          %s2036 = sadd.s32 %s2034, %s2035
          %s2037 = smul.addr %s2036, 128
          %s2038 = scalar_lea.hbm %s12, %s2037
          %s2040 = sshll.u32 %s2013, 4
          %s2041 = int_to_ptr.vmem [resolvable:$true] %s2040
          %2043 = dma.vmem_to_hbm [thread:$0]  %s2041, 512, %s2038, %s2010
        $region112: #{tpu_custom_call.1} parent=63 // pred_fallthru
          _
      $region64: #{tpu_custom_call.1} parent=5 // pred_fallthru
        _
      %p2044 = scmp.le.s32.totalorder 2, %s33
      // Predicated region
      $region113: #{tpu_custom_call.1} parent=5 // pred_check
        %p2045 = pneg %p2044
      $region114: #{tpu_custom_call.1} parent=5 // pred_check_branch
        %2047 = sbr.rel (%p2045) target = $region116
      $region115: #{tpu_custom_call.1} parent=5 // pred_region
        %s2048 = ssub.s32 %s33, 2
        // Predicated region
        $region117: #{tpu_custom_call.1} parent=115 // pred_check
          %p2049 = pneg %p331
        $region118: #{tpu_custom_call.1} parent=115 // pred_check_branch
          %2051 = sbr.rel (%p2049) target = $region120
        $region119: #{tpu_custom_call.1} parent=115 // pred_region
          %s2052 = sand.u32 %s316, 1
          %s2053 = scalar_lea.sflag [#allocation8], %s2052
          %s2054 = sand.u32 %s316, 1
          %s2055 = smul.addr %s2054, 8
          %s2056 = scalar_lea.vmem [#allocation18], %s2055
          %2057 = dma.done %s2053, 128
        $region120: #{tpu_custom_call.1} parent=115 // pred_fallthru
          _
        // Predicated region
        $region121: #{tpu_custom_call.1} parent=115 // pred_check
          %p2058 = pneg %p359
        $region122: #{tpu_custom_call.1} parent=115 // pred_check_branch
          %2060 = sbr.rel (%p2058) target = $region124
        $region123: #{tpu_custom_call.1} parent=115 // pred_region
          %s2061 = sand.u32 %s344, 1
          %s2062 = scalar_lea.sflag [#allocation20], %s2061
          %s2063 = sand.u32 %s344, 1
          %s2064 = smul.addr %s2063, 32
          %s2065 = scalar_lea.vmem [#allocation19], %s2064
          %2066 = dma.done %s2062, 512
        $region124: #{tpu_custom_call.1} parent=115 // pred_fallthru
          _
      $region116: #{tpu_custom_call.1} parent=5 // pred_fallthru
        _
    $region6: #{tpu_custom_call.1} parent=1 // loop_footer
      %s37 = sadd.s32 1, %s33
    $region7: #{tpu_custom_call.1} parent=1 // loop_footer_branch
      %32 = sbr.rel target = $region3
    $region8: #{tpu_custom_call.1} parent=1 // loop_exit
      _
    %2067 = vsyncpa [#allocation7], 1
    %s2068 = scalar_lea.sflag [#allocation7], 1
    %2069 = vsyncpa %s2068, 1
    %2070 = vsyncpa [#allocation10], 1
    %s2071 = scalar_lea.sflag [#allocation10], 1
    %2072 = vsyncpa %s2071, 1
    %2073 = vsyncpa [#allocation13], 1
    %2074 = vsyncpa [#allocation16], 1
    %2075 = vsyncpa [#allocation8], 1
    %s2076 = scalar_lea.sflag [#allocation8], 1
    %2077 = vsyncpa %s2076, 1
    %2078 = vsyncpa [#allocation20], 1
    %s2079 = scalar_lea.sflag [#allocation20], 1
    %2080 = vsyncpa %s2079, 1

</llo_original>
